<compile_context>
chip_gen: v6e
topology: v6e:2x2x1
jax: 0.10.0
libtpu: 0.0.40
codegen_flags: <defaults>
</compile_context>

<pallas_src>
import functools
import math

import jax
import jax.numpy as jnp
from jax.experimental import pallas as pl
from jax.experimental.pallas import tpu as pltpu


# ------------------------- fused MHA kernel (single step) ------------------- #
def _mha_kernel(vl_ref,                                   # SMEM (B,) int32
                q_ref, k_ref, v_ref,                      # VMEM (B, L, d)
                wq_ref, wk_ref, wv_ref, wo_ref,           # VMEM weights
                o_ref,                                    # VMEM (B*Lq, nh)
                *, num_heads):
    B, Lq, dq = q_ref.shape
    _, Lk, dk = k_ref.shape
    dv = v_ref.shape[2]
    nh = wq_ref.shape[1]
    hd = nh // num_heads

    # Collapse the batch axis so each projection is a single MXU push.
    xq = q_ref[...].reshape(B * Lq, dq)
    xk = k_ref[...].reshape(B * Lk, dk)
    xv = v_ref[...].reshape(B * Lk, dv)

    # W_q already carries the 1/sqrt(head_dim) scale (folded at init time).
    # Operands keep their input dtype; accumulate in f32 on the MXU.
    q = jnp.dot(xq, wq_ref[...], preferred_element_type=jnp.float32)   # (B*Lq, nh)
    k = jnp.dot(xk, wk_ref[...], preferred_element_type=jnp.float32)   # (B*Lk, nh)
    v = jnp.dot(xv, wv_ref[...], preferred_element_type=jnp.float32)   # (B*Lk, nh)

    # Key-position iota: computed ONCE, shared by every batch & head.
    col = jax.lax.broadcasted_iota(jnp.int32, (Lq, Lk), 1)

    ctx_rows = []
    for b in range(B):                       # static unroll (B = 2)
        key_mask = col < vl_ref[b]           # SMEM scalar vs iota -> (Lq, Lk) bool
        qb = q[b * Lq:(b + 1) * Lq, :]       # static sublane slices
        kb = k[b * Lk:(b + 1) * Lk, :]
        vb = v[b * Lk:(b + 1) * Lk, :]
        heads = []
        for h in range(num_heads):           # static unroll (H = 4)
            lo, hi = h * hd, (h + 1) * hd
            # scores = q_h @ k_h^T via dot_general on last dims (no transpose).
            s = jax.lax.dot_general(
                qb[:, lo:hi], kb[:, lo:hi], (((1,), (1,)), ((), ())),
                preferred_element_type=jnp.float32)                   # (Lq, Lk)
            s = jnp.where(key_mask, s, jnp.float32(-1e6))
            # Numerically stable softmax in f32; EXACT divide (approx
            # reciprocal was outside the 1e-3 tolerance).
            s = s - jnp.max(s, axis=-1, keepdims=True)
            p = jnp.exp(s)
            p = p / jnp.sum(p, axis=-1, keepdims=True)
            heads.append(jnp.dot(p, vb[:, lo:hi],
                                 preferred_element_type=jnp.float32))  # (Lq, hd)
        ctx_rows.append(jnp.concatenate(heads, axis=-1))               # (Lq, nh)
    ctx = jnp.concatenate(ctx_rows, axis=0)                            # (B*Lq, nh)

    # Single fused output projection: one MXU push for all batches and heads.
    out = jnp.dot(ctx, wo_ref[...], preferred_element_type=jnp.float32)
    o_ref[...] = out.astype(o_ref.dtype)


def multi_head_attention(params, queries, keys, values, valid_lens, num_heads):
    """queries/keys/values: (B, L, d); valid_lens: None or (B,) int."""
    B, Lq, dq = queries.shape
    _, Lk, dk = keys.shape
    _, _, dv = values.shape
    nh = params["W_q"].shape[1]

    if valid_lens is None:
        vl = jnp.full((B,), Lk, dtype=jnp.int32)
    elif valid_lens.ndim == 1:
        vl = valid_lens.astype(jnp.int32)
    else:
        # TODO(synk): per-query (B, Lq) valid_lens needs a per-row mask built
        # from an SMEM (B*Lq,) table; not exercised by the reference module.
        raise NotImplementedError("2-D valid_lens not supported")

    kernel = functools.partial(_mha_kernel, num_heads=num_heads)

    grid_spec = pltpu.PrefetchScalarGridSpec(
        num_scalar_prefetch=1,            # valid_lens -> SMEM scalars
        grid=(1,),                        # whole problem fits in VMEM: one step
        in_specs=[
            pl.BlockSpec((B, Lq, dq), lambda i, vl: (0, 0, 0)),   # queries
            pl.BlockSpec((B, Lk, dk), lambda i, vl: (0, 0, 0)),   # keys
            pl.BlockSpec((B, Lk, dv), lambda i, vl: (0, 0, 0)),   # values
            pl.BlockSpec((dq, nh), lambda i, vl: (0, 0)),         # W_q (pre-scaled)
            pl.BlockSpec((dk, nh), lambda i, vl: (0, 0)),         # W_k
            pl.BlockSpec((dv, nh), lambda i, vl: (0, 0)),         # W_v
            pl.BlockSpec((nh, nh), lambda i, vl: (0, 0)),         # W_o
        ],
        out_specs=pl.BlockSpec((B * Lq, nh), lambda i, vl: (0, 0)),
    )
    out2d = pl.pallas_call(
        kernel,
        out_shape=jax.ShapeDtypeStruct((B * Lq, nh), queries.dtype),
        grid_spec=grid_spec,
        # Single sequential step: no batch-axis sharding at this size (review #2).
        compiler_params=pltpu.CompilerParams(
            dimension_semantics=("arbitrary",)),
    )(vl, queries, keys, values,
      params["W_q_scaled"], params["W_k"], params["W_v"], params["W_o"])
    return out2d.reshape(B, Lq, nh)


# --------------------------- init (torch-compatible) ------------------------ #
def kaiming_uniform(key, shape_out_in):
    # torch.nn.init.kaiming_uniform_ default: a=0, fan_in = in_features
    out_f, in_f = shape_out_in
    bound = math.sqrt(6.0 / in_f)
    return jax.random.uniform(
        key, (out_f, in_f), dtype=jnp.float32, minval=-bound, maxval=bound)


def init_params(key, key_size, query_size, value_size, num_hiddens, num_heads):
    kq, kk, kv, ko = jax.random.split(key, 4)
    # stored transposed as (in, out) so forward is x @ W
    W_q = kaiming_uniform(kq, (num_hiddens, query_size)).T
    W_k = kaiming_uniform(kk, (num_hiddens, key_size)).T
    W_v = kaiming_uniform(kv, (num_hiddens, value_size)).T
    W_o = kaiming_uniform(ko, (num_hiddens, num_hiddens)).T
    head_dim = num_hiddens // num_heads
    return {
        "W_q": W_q,                                       # torch-equivalent (reference)
        "W_q_scaled": W_q / math.sqrt(head_dim),          # scale folded once at init (kernel)
        "W_k": W_k,
        "W_v": W_v,
        "W_o": W_o,
    }


# ----------------------------- reference (pure JAX) ------------------------- #
def _transpose_qkv(X, num_heads):
    B, L, nh = X.shape
    X = X.reshape(B, L, num_heads, nh // num_heads)
    X = jnp.transpose(X, (0, 2, 1, 3))
    return X.reshape(B * num_heads, L, nh // num_heads)


def _transpose_output(X, num_heads):
    BH, L, hd = X.shape
    X = X.reshape(BH // num_heads, num_heads, L, hd)
    X = jnp.transpose(X, (0, 2, 1, 3))
    return X.reshape(BH // num_heads, L, num_heads * hd)


def reference(params, queries, keys, values, valid_lens, num_heads):
    q = _transpose_qkv(queries @ params["W_q"], num_heads)
    k = _transpose_qkv(keys @ params["W_k"], num_heads)
    v = _transpose_qkv(values @ params["W_v"], num_heads)
    vl = jnp.repeat(valid_lens.astype(jnp.int32), num_heads, axis=0)
    d = q.shape[-1]
    scores = jnp.einsum("bqd,bkd->bqk", q, k) / jnp.sqrt(jnp.float32(d))
    col = jnp.arange(scores.shape[-1])[None, None, :]
    scores = jnp.where(col < vl[:, None, None], scores, -1e6)
    p = jax.nn.softmax(scores, axis=-1)
    out = jnp.einsum("bqk,bkd->bqd", p, v)
    return _transpose_output(out, num_heads) @ params["W_o"]


# --------------------------------- main ------------------------------------- #
if __name__ == "__main__":
    B = 2
    L = 8
    key_size = query_size = value_size = 32
    num_hiddens = 32
    num_heads = 4
    # dropout = 0 in the reference module -> no dropout applied.

    root = jax.random.PRNGKey(0)
    kp, kq, kk, kv = jax.random.split(root, 4)

    params = init_params(kp, key_size, query_size, value_size, num_hiddens,
                         num_heads)
    queries = jax.random.normal(kq, (B, L, query_size), dtype=jnp.float32)
    keys = jax.random.normal(kk, (B, L, key_size), dtype=jnp.float32)
    values = jax.random.normal(kv, (B, L, value_size), dtype=jnp.float32)
    valid_lens = jnp.array([3, 2], dtype=jnp.int32)

    out = multi_head_attention(params, queries, keys, values, valid_lens,
                               num_heads)
    out = jax.block_until_ready(out)

    ref = reference(params, queries, keys, values, valid_lens, num_heads)
    assert out.shape == (B, L, num_hiddens)
    assert jnp.allclose(out, ref, atol=1e-3, rtol=1e-3), "mismatch vs reference"

    print("KERNEL_OK")
</pallas_src>

<mosaic_0001>
module attributes {stable_mosaic.version = 11 : i64} {
  func.func @_mha_kernel(%arg0: i32, %arg1: memref<2xi32, #tpu.memory_space<smem>>, %arg2: memref<2x8x32xf32, #tpu.memory_space<vmem>>, %arg3: memref<2x8x32xf32, #tpu.memory_space<vmem>>, %arg4: memref<2x8x32xf32, #tpu.memory_space<vmem>>, %arg5: memref<32x32xf32, #tpu.memory_space<vmem>>, %arg6: memref<32x32xf32, #tpu.memory_space<vmem>>, %arg7: memref<32x32xf32, #tpu.memory_space<vmem>>, %arg8: memref<32x32xf32, #tpu.memory_space<vmem>>, %arg9: memref<16x32xf32, #tpu.memory_space<vmem>>) attributes {dimension_semantics = [#tpu.dimension_semantics<arbitrary>], iteration_bounds = array<i64: 1>, scalar_prefetch = 1 : i64, scratch_operands = 0 : i64, tpu.core_type = #tpu.core_type<tc>, window_params = [{pipeline_mode = #tpu.pipeline_mode<synchronous>, transform_indices = @transform_0, window_bounds = array<i64: 2, 8, 32>}, {pipeline_mode = #tpu.pipeline_mode<synchronous>, transform_indices = @transform_1, window_bounds = array<i64: 2, 8, 32>}, {pipeline_mode = #tpu.pipeline_mode<synchronous>, transform_indices = @transform_2, window_bounds = array<i64: 2, 8, 32>}, {pipeline_mode = #tpu.pipeline_mode<synchronous>, transform_indices = @transform_3, window_bounds = array<i64: 32, 32>}, {pipeline_mode = #tpu.pipeline_mode<synchronous>, transform_indices = @transform_4, window_bounds = array<i64: 32, 32>}, {pipeline_mode = #tpu.pipeline_mode<synchronous>, transform_indices = @transform_5, window_bounds = array<i64: 32, 32>}, {pipeline_mode = #tpu.pipeline_mode<synchronous>, transform_indices = @transform_6, window_bounds = array<i64: 32, 32>}, {pipeline_mode = #tpu.pipeline_mode<synchronous>, transform_indices = @transform_7, window_bounds = array<i64: 16, 32>}]} {
    %c0 = arith.constant 0 : index
    %c0_0 = arith.constant 0 : index
    %c0_1 = arith.constant 0 : index
    %0 = vector.load %arg2[%c0, %c0_0, %c0_1] : memref<2x8x32xf32, #tpu.memory_space<vmem>>, vector<2x8x32xf32>
    %1 = vector.shape_cast %0 : vector<2x8x32xf32> to vector<16x32xf32>
    %c0_2 = arith.constant 0 : index
    %c0_3 = arith.constant 0 : index
    %c0_4 = arith.constant 0 : index
    %2 = vector.load %arg3[%c0_2, %c0_3, %c0_4] : memref<2x8x32xf32, #tpu.memory_space<vmem>>, vector<2x8x32xf32>
    %3 = vector.shape_cast %2 : vector<2x8x32xf32> to vector<16x32xf32>
    %c0_5 = arith.constant 0 : index
    %c0_6 = arith.constant 0 : index
    %c0_7 = arith.constant 0 : index
    %4 = vector.load %arg4[%c0_5, %c0_6, %c0_7] : memref<2x8x32xf32, #tpu.memory_space<vmem>>, vector<2x8x32xf32>
    %5 = vector.shape_cast %4 : vector<2x8x32xf32> to vector<16x32xf32>
    %c0_8 = arith.constant 0 : index
    %c0_9 = arith.constant 0 : index
    %6 = vector.load %arg5[%c0_8, %c0_9] : memref<32x32xf32, #tpu.memory_space<vmem>>, vector<32x32xf32>
    %cst = arith.constant dense<0.000000e+00> : vector<16x32xf32>
    %7 = tpu.matmul %1, %6, %cst {dimension_numbers = #tpu.dot_dimension_numbers<[1], [0], [0], [1], [0, 0, 1, 1], [], []>} : vector<16x32xf32>, vector<32x32xf32>, vector<16x32xf32> -> vector<16x32xf32>
    %c0_10 = arith.constant 0 : index
    %c0_11 = arith.constant 0 : index
    %8 = vector.load %arg6[%c0_10, %c0_11] : memref<32x32xf32, #tpu.memory_space<vmem>>, vector<32x32xf32>
    %cst_12 = arith.constant dense<0.000000e+00> : vector<16x32xf32>
    %9 = tpu.matmul %3, %8, %cst_12 {dimension_numbers = #tpu.dot_dimension_numbers<[1], [0], [0], [1], [0, 0, 1, 1], [], []>} : vector<16x32xf32>, vector<32x32xf32>, vector<16x32xf32> -> vector<16x32xf32>
    %c0_13 = arith.constant 0 : index
    %c0_14 = arith.constant 0 : index
    %10 = vector.load %arg7[%c0_13, %c0_14] : memref<32x32xf32, #tpu.memory_space<vmem>>, vector<32x32xf32>
    %cst_15 = arith.constant dense<0.000000e+00> : vector<16x32xf32>
    %11 = tpu.matmul %5, %10, %cst_15 {dimension_numbers = #tpu.dot_dimension_numbers<[1], [0], [0], [1], [0, 0, 1, 1], [], []>} : vector<16x32xf32>, vector<32x32xf32>, vector<16x32xf32> -> vector<16x32xf32>
    %12 = tpu.iota {dimensions = array<i32: 1>} : vector<8x8xi32>
    %c0_16 = arith.constant 0 : index
    %13 = memref.load %arg1[%c0_16] : memref<2xi32, #tpu.memory_space<smem>>
    %14 = vector.broadcast %13 : i32 to vector<8x8xi32>
    %15 = arith.cmpi slt, %12, %14 : vector<8x8xi32>
    %16 = vector.extract_strided_slice %7 {offsets = [0, 0], sizes = [8, 32], strides = [1, 1]} : vector<16x32xf32> to vector<8x32xf32>
    %17 = vector.extract_strided_slice %9 {offsets = [0, 0], sizes = [8, 32], strides = [1, 1]} : vector<16x32xf32> to vector<8x32xf32>
    %18 = vector.extract_strided_slice %11 {offsets = [0, 0], sizes = [8, 32], strides = [1, 1]} : vector<16x32xf32> to vector<8x32xf32>
    %19 = vector.extract_strided_slice %16 {offsets = [0, 0], sizes = [8, 8], strides = [1, 1]} : vector<8x32xf32> to vector<8x8xf32>
    %20 = vector.extract_strided_slice %17 {offsets = [0, 0], sizes = [8, 8], strides = [1, 1]} : vector<8x32xf32> to vector<8x8xf32>
    %cst_17 = arith.constant dense<0.000000e+00> : vector<8x8xf32>
    %21 = tpu.matmul %19, %20, %cst_17 {dimension_numbers = #tpu.dot_dimension_numbers<[1], [1], [0], [0], [0, 0, 1, 0], [], []>} : vector<8x8xf32>, vector<8x8xf32>, vector<8x8xf32> -> vector<8x8xf32>
    %cst_18 = arith.constant -1.000000e+06 : f32
    %22 = vector.broadcast %cst_18 : f32 to vector<8x8xf32>
    %23 = arith.select %15, %21, %22 : vector<8x8xi1>, vector<8x8xf32>
    %cst_19 = arith.constant dense<0xFF800000> : vector<8xf32>
    %24 = vector.multi_reduction <maximumf>, %23, %cst_19 [1] : vector<8x8xf32> to vector<8xf32>
    %25 = vector.shape_cast %24 : vector<8xf32> to vector<8x1xf32>
    %26 = vector.broadcast %25 : vector<8x1xf32> to vector<8x8xf32>
    %27 = arith.subf %23, %26 : vector<8x8xf32>
    %28 = math.exp %27 : vector<8x8xf32>
    %cst_20 = arith.constant dense<0.000000e+00> : vector<8xf32>
    %29 = vector.multi_reduction <add>, %28, %cst_20 [1] : vector<8x8xf32> to vector<8xf32>
    %30 = vector.shape_cast %29 : vector<8xf32> to vector<8x1xf32>
    %31 = vector.broadcast %30 : vector<8x1xf32> to vector<8x8xf32>
    %32 = arith.divf %28, %31 : vector<8x8xf32>
    %33 = vector.extract_strided_slice %18 {offsets = [0, 0], sizes = [8, 8], strides = [1, 1]} : vector<8x32xf32> to vector<8x8xf32>
    %cst_21 = arith.constant dense<0.000000e+00> : vector<8x8xf32>
    %34 = tpu.matmul %32, %33, %cst_21 {dimension_numbers = #tpu.dot_dimension_numbers<[1], [0], [0], [1], [0, 0, 1, 1], [], []>} : vector<8x8xf32>, vector<8x8xf32>, vector<8x8xf32> -> vector<8x8xf32>
    %35 = vector.extract_strided_slice %16 {offsets = [0, 8], sizes = [8, 8], strides = [1, 1]} : vector<8x32xf32> to vector<8x8xf32>
    %36 = vector.extract_strided_slice %17 {offsets = [0, 8], sizes = [8, 8], strides = [1, 1]} : vector<8x32xf32> to vector<8x8xf32>
    %cst_22 = arith.constant dense<0.000000e+00> : vector<8x8xf32>
    %37 = tpu.matmul %35, %36, %cst_22 {dimension_numbers = #tpu.dot_dimension_numbers<[1], [1], [0], [0], [0, 0, 1, 0], [], []>} : vector<8x8xf32>, vector<8x8xf32>, vector<8x8xf32> -> vector<8x8xf32>
    %cst_23 = arith.constant -1.000000e+06 : f32
    %38 = vector.broadcast %cst_23 : f32 to vector<8x8xf32>
    %39 = arith.select %15, %37, %38 : vector<8x8xi1>, vector<8x8xf32>
    %cst_24 = arith.constant dense<0xFF800000> : vector<8xf32>
    %40 = vector.multi_reduction <maximumf>, %39, %cst_24 [1] : vector<8x8xf32> to vector<8xf32>
    %41 = vector.shape_cast %40 : vector<8xf32> to vector<8x1xf32>
    %42 = vector.broadcast %41 : vector<8x1xf32> to vector<8x8xf32>
    %43 = arith.subf %39, %42 : vector<8x8xf32>
    %44 = math.exp %43 : vector<8x8xf32>
    %cst_25 = arith.constant dense<0.000000e+00> : vector<8xf32>
    %45 = vector.multi_reduction <add>, %44, %cst_25 [1] : vector<8x8xf32> to vector<8xf32>
    %46 = vector.shape_cast %45 : vector<8xf32> to vector<8x1xf32>
    %47 = vector.broadcast %46 : vector<8x1xf32> to vector<8x8xf32>
    %48 = arith.divf %44, %47 : vector<8x8xf32>
    %49 = vector.extract_strided_slice %18 {offsets = [0, 8], sizes = [8, 8], strides = [1, 1]} : vector<8x32xf32> to vector<8x8xf32>
    %cst_26 = arith.constant dense<0.000000e+00> : vector<8x8xf32>
    %50 = tpu.matmul %48, %49, %cst_26 {dimension_numbers = #tpu.dot_dimension_numbers<[1], [0], [0], [1], [0, 0, 1, 1], [], []>} : vector<8x8xf32>, vector<8x8xf32>, vector<8x8xf32> -> vector<8x8xf32>
    %51 = vector.extract_strided_slice %16 {offsets = [0, 16], sizes = [8, 8], strides = [1, 1]} : vector<8x32xf32> to vector<8x8xf32>
    %52 = vector.extract_strided_slice %17 {offsets = [0, 16], sizes = [8, 8], strides = [1, 1]} : vector<8x32xf32> to vector<8x8xf32>
    %cst_27 = arith.constant dense<0.000000e+00> : vector<8x8xf32>
    %53 = tpu.matmul %51, %52, %cst_27 {dimension_numbers = #tpu.dot_dimension_numbers<[1], [1], [0], [0], [0, 0, 1, 0], [], []>} : vector<8x8xf32>, vector<8x8xf32>, vector<8x8xf32> -> vector<8x8xf32>
    %cst_28 = arith.constant -1.000000e+06 : f32
    %54 = vector.broadcast %cst_28 : f32 to vector<8x8xf32>
    %55 = arith.select %15, %53, %54 : vector<8x8xi1>, vector<8x8xf32>
    %cst_29 = arith.constant dense<0xFF800000> : vector<8xf32>
    %56 = vector.multi_reduction <maximumf>, %55, %cst_29 [1] : vector<8x8xf32> to vector<8xf32>
    %57 = vector.shape_cast %56 : vector<8xf32> to vector<8x1xf32>
    %58 = vector.broadcast %57 : vector<8x1xf32> to vector<8x8xf32>
    %59 = arith.subf %55, %58 : vector<8x8xf32>
    %60 = math.exp %59 : vector<8x8xf32>
    %cst_30 = arith.constant dense<0.000000e+00> : vector<8xf32>
    %61 = vector.multi_reduction <add>, %60, %cst_30 [1] : vector<8x8xf32> to vector<8xf32>
    %62 = vector.shape_cast %61 : vector<8xf32> to vector<8x1xf32>
    %63 = vector.broadcast %62 : vector<8x1xf32> to vector<8x8xf32>
    %64 = arith.divf %60, %63 : vector<8x8xf32>
    %65 = vector.extract_strided_slice %18 {offsets = [0, 16], sizes = [8, 8], strides = [1, 1]} : vector<8x32xf32> to vector<8x8xf32>
    %cst_31 = arith.constant dense<0.000000e+00> : vector<8x8xf32>
    %66 = tpu.matmul %64, %65, %cst_31 {dimension_numbers = #tpu.dot_dimension_numbers<[1], [0], [0], [1], [0, 0, 1, 1], [], []>} : vector<8x8xf32>, vector<8x8xf32>, vector<8x8xf32> -> vector<8x8xf32>
    %67 = vector.extract_strided_slice %16 {offsets = [0, 24], sizes = [8, 8], strides = [1, 1]} : vector<8x32xf32> to vector<8x8xf32>
    %68 = vector.extract_strided_slice %17 {offsets = [0, 24], sizes = [8, 8], strides = [1, 1]} : vector<8x32xf32> to vector<8x8xf32>
    %cst_32 = arith.constant dense<0.000000e+00> : vector<8x8xf32>
    %69 = tpu.matmul %67, %68, %cst_32 {dimension_numbers = #tpu.dot_dimension_numbers<[1], [1], [0], [0], [0, 0, 1, 0], [], []>} : vector<8x8xf32>, vector<8x8xf32>, vector<8x8xf32> -> vector<8x8xf32>
    %cst_33 = arith.constant -1.000000e+06 : f32
    %70 = vector.broadcast %cst_33 : f32 to vector<8x8xf32>
    %71 = arith.select %15, %69, %70 : vector<8x8xi1>, vector<8x8xf32>
    %cst_34 = arith.constant dense<0xFF800000> : vector<8xf32>
    %72 = vector.multi_reduction <maximumf>, %71, %cst_34 [1] : vector<8x8xf32> to vector<8xf32>
    %73 = vector.shape_cast %72 : vector<8xf32> to vector<8x1xf32>
    %74 = vector.broadcast %73 : vector<8x1xf32> to vector<8x8xf32>
    %75 = arith.subf %71, %74 : vector<8x8xf32>
    %76 = math.exp %75 : vector<8x8xf32>
    %cst_35 = arith.constant dense<0.000000e+00> : vector<8xf32>
    %77 = vector.multi_reduction <add>, %76, %cst_35 [1] : vector<8x8xf32> to vector<8xf32>
    %78 = vector.shape_cast %77 : vector<8xf32> to vector<8x1xf32>
    %79 = vector.broadcast %78 : vector<8x1xf32> to vector<8x8xf32>
    %80 = arith.divf %76, %79 : vector<8x8xf32>
    %81 = vector.extract_strided_slice %18 {offsets = [0, 24], sizes = [8, 8], strides = [1, 1]} : vector<8x32xf32> to vector<8x8xf32>
    %cst_36 = arith.constant dense<0.000000e+00> : vector<8x8xf32>
    %82 = tpu.matmul %80, %81, %cst_36 {dimension_numbers = #tpu.dot_dimension_numbers<[1], [0], [0], [1], [0, 0, 1, 1], [], []>} : vector<8x8xf32>, vector<8x8xf32>, vector<8x8xf32> -> vector<8x8xf32>
    %83 = tpu.concatenate %34, %50, %66, %82 in 1 : vector<8x8xf32>, vector<8x8xf32>, vector<8x8xf32>, vector<8x8xf32> -> vector<8x32xf32>
    %c1 = arith.constant 1 : index
    %84 = memref.load %arg1[%c1] : memref<2xi32, #tpu.memory_space<smem>>
    %85 = vector.broadcast %84 : i32 to vector<8x8xi32>
    %86 = arith.cmpi slt, %12, %85 : vector<8x8xi32>
    %87 = vector.extract_strided_slice %7 {offsets = [8, 0], sizes = [8, 32], strides = [1, 1]} : vector<16x32xf32> to vector<8x32xf32>
    %88 = vector.extract_strided_slice %9 {offsets = [8, 0], sizes = [8, 32], strides = [1, 1]} : vector<16x32xf32> to vector<8x32xf32>
    %89 = vector.extract_strided_slice %11 {offsets = [8, 0], sizes = [8, 32], strides = [1, 1]} : vector<16x32xf32> to vector<8x32xf32>
    %90 = vector.extract_strided_slice %87 {offsets = [0, 0], sizes = [8, 8], strides = [1, 1]} : vector<8x32xf32> to vector<8x8xf32>
    %91 = vector.extract_strided_slice %88 {offsets = [0, 0], sizes = [8, 8], strides = [1, 1]} : vector<8x32xf32> to vector<8x8xf32>
    %cst_37 = arith.constant dense<0.000000e+00> : vector<8x8xf32>
    %92 = tpu.matmul %90, %91, %cst_37 {dimension_numbers = #tpu.dot_dimension_numbers<[1], [1], [0], [0], [0, 0, 1, 0], [], []>} : vector<8x8xf32>, vector<8x8xf32>, vector<8x8xf32> -> vector<8x8xf32>
    %cst_38 = arith.constant -1.000000e+06 : f32
    %93 = vector.broadcast %cst_38 : f32 to vector<8x8xf32>
    %94 = arith.select %86, %92, %93 : vector<8x8xi1>, vector<8x8xf32>
    %cst_39 = arith.constant dense<0xFF800000> : vector<8xf32>
    %95 = vector.multi_reduction <maximumf>, %94, %cst_39 [1] : vector<8x8xf32> to vector<8xf32>
    %96 = vector.shape_cast %95 : vector<8xf32> to vector<8x1xf32>
    %97 = vector.broadcast %96 : vector<8x1xf32> to vector<8x8xf32>
    %98 = arith.subf %94, %97 : vector<8x8xf32>
    %99 = math.exp %98 : vector<8x8xf32>
    %cst_40 = arith.constant dense<0.000000e+00> : vector<8xf32>
    %100 = vector.multi_reduction <add>, %99, %cst_40 [1] : vector<8x8xf32> to vector<8xf32>
    %101 = vector.shape_cast %100 : vector<8xf32> to vector<8x1xf32>
    %102 = vector.broadcast %101 : vector<8x1xf32> to vector<8x8xf32>
    %103 = arith.divf %99, %102 : vector<8x8xf32>
    %104 = vector.extract_strided_slice %89 {offsets = [0, 0], sizes = [8, 8], strides = [1, 1]} : vector<8x32xf32> to vector<8x8xf32>
    %cst_41 = arith.constant dense<0.000000e+00> : vector<8x8xf32>
    %105 = tpu.matmul %103, %104, %cst_41 {dimension_numbers = #tpu.dot_dimension_numbers<[1], [0], [0], [1], [0, 0, 1, 1], [], []>} : vector<8x8xf32>, vector<8x8xf32>, vector<8x8xf32> -> vector<8x8xf32>
    %106 = vector.extract_strided_slice %87 {offsets = [0, 8], sizes = [8, 8], strides = [1, 1]} : vector<8x32xf32> to vector<8x8xf32>
    %107 = vector.extract_strided_slice %88 {offsets = [0, 8], sizes = [8, 8], strides = [1, 1]} : vector<8x32xf32> to vector<8x8xf32>
    %cst_42 = arith.constant dense<0.000000e+00> : vector<8x8xf32>
    %108 = tpu.matmul %106, %107, %cst_42 {dimension_numbers = #tpu.dot_dimension_numbers<[1], [1], [0], [0], [0, 0, 1, 0], [], []>} : vector<8x8xf32>, vector<8x8xf32>, vector<8x8xf32> -> vector<8x8xf32>
    %cst_43 = arith.constant -1.000000e+06 : f32
    %109 = vector.broadcast %cst_43 : f32 to vector<8x8xf32>
    %110 = arith.select %86, %108, %109 : vector<8x8xi1>, vector<8x8xf32>
    %cst_44 = arith.constant dense<0xFF800000> : vector<8xf32>
    %111 = vector.multi_reduction <maximumf>, %110, %cst_44 [1] : vector<8x8xf32> to vector<8xf32>
    %112 = vector.shape_cast %111 : vector<8xf32> to vector<8x1xf32>
    %113 = vector.broadcast %112 : vector<8x1xf32> to vector<8x8xf32>
    %114 = arith.subf %110, %113 : vector<8x8xf32>
    %115 = math.exp %114 : vector<8x8xf32>
    %cst_45 = arith.constant dense<0.000000e+00> : vector<8xf32>
    %116 = vector.multi_reduction <add>, %115, %cst_45 [1] : vector<8x8xf32> to vector<8xf32>
    %117 = vector.shape_cast %116 : vector<8xf32> to vector<8x1xf32>
    %118 = vector.broadcast %117 : vector<8x1xf32> to vector<8x8xf32>
    %119 = arith.divf %115, %118 : vector<8x8xf32>
    %120 = vector.extract_strided_slice %89 {offsets = [0, 8], sizes = [8, 8], strides = [1, 1]} : vector<8x32xf32> to vector<8x8xf32>
    %cst_46 = arith.constant dense<0.000000e+00> : vector<8x8xf32>
    %121 = tpu.matmul %119, %120, %cst_46 {dimension_numbers = #tpu.dot_dimension_numbers<[1], [0], [0], [1], [0, 0, 1, 1], [], []>} : vector<8x8xf32>, vector<8x8xf32>, vector<8x8xf32> -> vector<8x8xf32>
    %122 = vector.extract_strided_slice %87 {offsets = [0, 16], sizes = [8, 8], strides = [1, 1]} : vector<8x32xf32> to vector<8x8xf32>
    %123 = vector.extract_strided_slice %88 {offsets = [0, 16], sizes = [8, 8], strides = [1, 1]} : vector<8x32xf32> to vector<8x8xf32>
    %cst_47 = arith.constant dense<0.000000e+00> : vector<8x8xf32>
    %124 = tpu.matmul %122, %123, %cst_47 {dimension_numbers = #tpu.dot_dimension_numbers<[1], [1], [0], [0], [0, 0, 1, 0], [], []>} : vector<8x8xf32>, vector<8x8xf32>, vector<8x8xf32> -> vector<8x8xf32>
    %cst_48 = arith.constant -1.000000e+06 : f32
    %125 = vector.broadcast %cst_48 : f32 to vector<8x8xf32>
    %126 = arith.select %86, %124, %125 : vector<8x8xi1>, vector<8x8xf32>
    %cst_49 = arith.constant dense<0xFF800000> : vector<8xf32>
    %127 = vector.multi_reduction <maximumf>, %126, %cst_49 [1] : vector<8x8xf32> to vector<8xf32>
    %128 = vector.shape_cast %127 : vector<8xf32> to vector<8x1xf32>
    %129 = vector.broadcast %128 : vector<8x1xf32> to vector<8x8xf32>
    %130 = arith.subf %126, %129 : vector<8x8xf32>
    %131 = math.exp %130 : vector<8x8xf32>
    %cst_50 = arith.constant dense<0.000000e+00> : vector<8xf32>
    %132 = vector.multi_reduction <add>, %131, %cst_50 [1] : vector<8x8xf32> to vector<8xf32>
    %133 = vector.shape_cast %132 : vector<8xf32> to vector<8x1xf32>
    %134 = vector.broadcast %133 : vector<8x1xf32> to vector<8x8xf32>
    %135 = arith.divf %131, %134 : vector<8x8xf32>
    %136 = vector.extract_strided_slice %89 {offsets = [0, 16], sizes = [8, 8], strides = [1, 1]} : vector<8x32xf32> to vector<8x8xf32>
    %cst_51 = arith.constant dense<0.000000e+00> : vector<8x8xf32>
    %137 = tpu.matmul %135, %136, %cst_51 {dimension_numbers = #tpu.dot_dimension_numbers<[1], [0], [0], [1], [0, 0, 1, 1], [], []>} : vector<8x8xf32>, vector<8x8xf32>, vector<8x8xf32> -> vector<8x8xf32>
    %138 = vector.extract_strided_slice %87 {offsets = [0, 24], sizes = [8, 8], strides = [1, 1]} : vector<8x32xf32> to vector<8x8xf32>
    %139 = vector.extract_strided_slice %88 {offsets = [0, 24], sizes = [8, 8], strides = [1, 1]} : vector<8x32xf32> to vector<8x8xf32>
    %cst_52 = arith.constant dense<0.000000e+00> : vector<8x8xf32>
    %140 = tpu.matmul %138, %139, %cst_52 {dimension_numbers = #tpu.dot_dimension_numbers<[1], [1], [0], [0], [0, 0, 1, 0], [], []>} : vector<8x8xf32>, vector<8x8xf32>, vector<8x8xf32> -> vector<8x8xf32>
    %cst_53 = arith.constant -1.000000e+06 : f32
    %141 = vector.broadcast %cst_53 : f32 to vector<8x8xf32>
    %142 = arith.select %86, %140, %141 : vector<8x8xi1>, vector<8x8xf32>
    %cst_54 = arith.constant dense<0xFF800000> : vector<8xf32>
    %143 = vector.multi_reduction <maximumf>, %142, %cst_54 [1] : vector<8x8xf32> to vector<8xf32>
    %144 = vector.shape_cast %143 : vector<8xf32> to vector<8x1xf32>
    %145 = vector.broadcast %144 : vector<8x1xf32> to vector<8x8xf32>
    %146 = arith.subf %142, %145 : vector<8x8xf32>
    %147 = math.exp %146 : vector<8x8xf32>
    %cst_55 = arith.constant dense<0.000000e+00> : vector<8xf32>
    %148 = vector.multi_reduction <add>, %147, %cst_55 [1] : vector<8x8xf32> to vector<8xf32>
    %149 = vector.shape_cast %148 : vector<8xf32> to vector<8x1xf32>
    %150 = vector.broadcast %149 : vector<8x1xf32> to vector<8x8xf32>
    %151 = arith.divf %147, %150 : vector<8x8xf32>
    %152 = vector.extract_strided_slice %89 {offsets = [0, 24], sizes = [8, 8], strides = [1, 1]} : vector<8x32xf32> to vector<8x8xf32>
    %cst_56 = arith.constant dense<0.000000e+00> : vector<8x8xf32>
    %153 = tpu.matmul %151, %152, %cst_56 {dimension_numbers = #tpu.dot_dimension_numbers<[1], [0], [0], [1], [0, 0, 1, 1], [], []>} : vector<8x8xf32>, vector<8x8xf32>, vector<8x8xf32> -> vector<8x8xf32>
    %154 = tpu.concatenate %105, %121, %137, %153 in 1 : vector<8x8xf32>, vector<8x8xf32>, vector<8x8xf32>, vector<8x8xf32> -> vector<8x32xf32>
    %155 = tpu.concatenate %83, %154 in 0 : vector<8x32xf32>, vector<8x32xf32> -> vector<16x32xf32>
    %c0_57 = arith.constant 0 : index
    %c0_58 = arith.constant 0 : index
    %156 = vector.load %arg8[%c0_57, %c0_58] : memref<32x32xf32, #tpu.memory_space<vmem>>, vector<32x32xf32>
    %cst_59 = arith.constant dense<0.000000e+00> : vector<16x32xf32>
    %157 = tpu.matmul %155, %156, %cst_59 {dimension_numbers = #tpu.dot_dimension_numbers<[1], [0], [0], [1], [0, 0, 1, 1], [], []>} : vector<16x32xf32>, vector<32x32xf32>, vector<16x32xf32> -> vector<16x32xf32>
    %c0_60 = arith.constant 0 : index
    %c0_61 = arith.constant 0 : index
    %158 = vector.load %arg9[%c0_60, %c0_61] : memref<16x32xf32, #tpu.memory_space<vmem>>, vector<16x32xf32>
    tpu.vector_store %arg9[%c0_60, %c0_61], %157 {strides = array<i32>} : memref<16x32xf32, #tpu.memory_space<vmem>>, vector<16x32xf32>,
    return
  }
  func.func @transform_0(%arg0: i32, %arg1: memref<2xi32, #tpu.memory_space<smem>>) -> (i32, i32, i32) {
    %c0_i32 = arith.constant 0 : i32
    %c0_i32_0 = arith.constant 0 : i32
    %c0_i32_1 = arith.constant 0 : i32
    %c0_i32_2 = arith.constant 0 : i32
    return %c0_i32, %c0_i32_0, %c0_i32_1 : i32, i32, i32
  }
  func.func @transform_1(%arg0: i32, %arg1: memref<2xi32, #tpu.memory_space<smem>>) -> (i32, i32, i32) {
    %c0_i32 = arith.constant 0 : i32
    %c0_i32_0 = arith.constant 0 : i32
    %c0_i32_1 = arith.constant 0 : i32
    %c0_i32_2 = arith.constant 0 : i32
    return %c0_i32, %c0_i32_0, %c0_i32_1 : i32, i32, i32
  }
  func.func @transform_2(%arg0: i32, %arg1: memref<2xi32, #tpu.memory_space<smem>>) -> (i32, i32, i32) {
    %c0_i32 = arith.constant 0 : i32
    %c0_i32_0 = arith.constant 0 : i32
    %c0_i32_1 = arith.constant 0 : i32
    %c0_i32_2 = arith.constant 0 : i32
    return %c0_i32, %c0_i32_0, %c0_i32_1 : i32, i32, i32
  }
  func.func @transform_3(%arg0: i32, %arg1: memref<2xi32, #tpu.memory_space<smem>>) -> (i32, i32) {
    %c0_i32 = arith.constant 0 : i32
    %c0_i32_0 = arith.constant 0 : i32
    %c0_i32_1 = arith.constant 0 : i32
    return %c0_i32, %c0_i32_0 : i32, i32
  }
  func.func @transform_4(%arg0: i32, %arg1: memref<2xi32, #tpu.memory_space<smem>>) -> (i32, i32) {
    %c0_i32 = arith.constant 0 : i32
    %c0_i32_0 = arith.constant 0 : i32
    %c0_i32_1 = arith.constant 0 : i32
    return %c0_i32, %c0_i32_0 : i32, i32
  }
  func.func @transform_5(%arg0: i32, %arg1: memref<2xi32, #tpu.memory_space<smem>>) -> (i32, i32) {
    %c0_i32 = arith.constant 0 : i32
    %c0_i32_0 = arith.constant 0 : i32
    %c0_i32_1 = arith.constant 0 : i32
    return %c0_i32, %c0_i32_0 : i32, i32
  }
  func.func @transform_6(%arg0: i32, %arg1: memref<2xi32, #tpu.memory_space<smem>>) -> (i32, i32) {
    %c0_i32 = arith.constant 0 : i32
    %c0_i32_0 = arith.constant 0 : i32
    %c0_i32_1 = arith.constant 0 : i32
    return %c0_i32, %c0_i32_0 : i32, i32
  }
  func.func @transform_7(%arg0: i32, %arg1: memref<2xi32, #tpu.memory_space<smem>>) -> (i32, i32) {
    %c0_i32 = arith.constant 0 : i32
    %c0_i32_0 = arith.constant 0 : i32
    %c0_i32_1 = arith.constant 0 : i32
    return %c0_i32, %c0_i32_0 : i32, i32
  }
}

</mosaic_0001>

<llo_original>
// kernel: tpu_custom_call.1
$region0: #{tpu_custom_call.1}
  #allocation0 [shape = 'u32[]', space=smem, size = 0x4, offset = 0x4, fixed_abs, tag = 'smem constant byte address 0x4 - core index']
  #allocation1 [shape = 'u32[144,128]{1,0:T(1,128)}', space=vmem, size = 0x12000, scoped, tag = 'internal scratch']
  #allocation2 [shape = 's32[1]{0}', space=sflag, size = 0x4, scoped, tag = 'scoped memory for tpu_custom_call.1']
  #allocation3 [shape = 'u8[512]{0}', space=smem, size = 0x200, scoped, tag = 'prefetched SMEM operand 0']
  %s0 = inlined_call_operand.hbm [shape: s32[2], index: 0, kind: input, shape index: {}]
  %s1 = inlined_call_operand.hbm [shape: f32[2,8,32], index: 1, kind: input, shape index: {}]
  %s2 = inlined_call_operand.hbm [shape: f32[2,8,32], index: 2, kind: input, shape index: {}]
  %s3 = inlined_call_operand.hbm [shape: f32[2,8,32], index: 3, kind: input, shape index: {}]
  %s4 = inlined_call_operand.hbm [shape: f32[32,32], index: 4, kind: input, shape index: {}]
  %s5 = inlined_call_operand.hbm [shape: f32[32,32], index: 5, kind: input, shape index: {}]
  %s6 = inlined_call_operand.hbm [shape: f32[32,32], index: 6, kind: input, shape index: {}]
  %s7 = inlined_call_operand.hbm [shape: f32[32,32], index: 7, kind: input, shape index: {}]
  %s8 = inlined_call_operand.hbm [shape: f32[16,32], index: 8, kind: output, shape index: {}]
  %s9 = sld [smem:[#allocation0]]
  $region66: #{tpu_custom_call.1} parent=0
    _
  %s11 = ssub.s32 1, %s9
  %s12 = scalar_select 0, %s11, %s9
  %14 = dma.hbm_to_smem %s0, 16, [#allocation3], [#allocation2]
  %15 = dma.done [#allocation2], 16
  %16 = sfence
  $region1: #{tpu_custom_call.1} parent=0
    #allocation4 [shape = 'u8[8192]{0}', space=vmem, size = 0x2000, scoped, tag = 'input window, operand 1, single buffered']
    #allocation5 [shape = 's32[1]{0}', space=sflag, size = 0x4, scoped, tag = 'scoped memory for tpu_custom_call.1']
    #allocation6 [shape = 's32[1]{0}', space=sflag, size = 0x4, scoped, tag = 'scoped memory for tpu_custom_call.1']
    #allocation7 [shape = 'u8[8192]{0}', space=vmem, size = 0x2000, scoped, tag = 'input window, operand 2, single buffered']
    #allocation8 [shape = 's32[1]{0}', space=sflag, size = 0x4, scoped, tag = 'scoped memory for tpu_custom_call.1']
    #allocation9 [shape = 'u8[8192]{0}', space=vmem, size = 0x2000, scoped, tag = 'input window, operand 3, single buffered']
    #allocation10 [shape = 'u8[16384]{0}', space=vmem, size = 0x4000, scoped, tag = 'input window, operand 4, single buffered']
    #allocation11 [shape = 's32[1]{0}', space=sflag, size = 0x4, scoped, tag = 'scoped memory for tpu_custom_call.1']
    #allocation12 [shape = 'u8[16384]{0}', space=vmem, size = 0x4000, scoped, tag = 'input window, operand 5, single buffered']
    #allocation13 [shape = 'u8[16384]{0}', space=vmem, size = 0x4000, scoped, tag = 'input window, operand 6, single buffered']
    #allocation14 [shape = 's32[1]{0}', space=sflag, size = 0x4, scoped, tag = 'scoped memory for tpu_custom_call.1']
    #allocation15 [shape = 'u8[16384]{0}', space=vmem, size = 0x4000, scoped, tag = 'input window, operand 7, single buffered']
    #allocation16 [shape = 'u8[8192]{0}', space=vmem, size = 0x2000, scoped, tag = 'output window, operand 0, single buffered']
    %17 = vsyncpa [#allocation5], 0
    %18 = vsyncpa [#allocation8], 0
    %19 = vsyncpa [#allocation11], 0
    %20 = vsyncpa [#allocation14], 0
    %21 = vsyncpa [#allocation6], 0
    // Predicated region
    $region2: #{tpu_custom_call.1} parent=1 // pred_check
      _
    $region3: #{tpu_custom_call.1} parent=1 // pred_check_branch
      %23 = sbr.rel (0) target = $region5
    $region4: #{tpu_custom_call.1} parent=1 // pred_region
      %s25 = ssub.s32 256, 256
      %26 = vsyncadd [#allocation5], %s25
      %s27 = sshll.u32 [#allocation4], 4
      %s28 = int_to_ptr.vmem [resolvable:$true] %s27
      %33 = dma.hbm_to_vmem [thread:$0]  %s1, 256, %s28, [#allocation5], 128, 128, 8
    $region5: #{tpu_custom_call.1} parent=1 // pred_fallthru
      _
    // Predicated region
    $region6: #{tpu_custom_call.1} parent=1 // pred_check
      _
    $region7: #{tpu_custom_call.1} parent=1 // pred_check_branch
      %35 = sbr.rel (0) target = $region9
    $region8: #{tpu_custom_call.1} parent=1 // pred_region
      %s37 = ssub.s32 256, 256
      %38 = vsyncadd [#allocation8], %s37
      %s39 = sshll.u32 [#allocation7], 4
      %s40 = int_to_ptr.vmem [resolvable:$true] %s39
      %45 = dma.hbm_to_vmem [thread:$0]  %s2, 256, %s40, [#allocation8], 128, 128, 8
    $region9: #{tpu_custom_call.1} parent=1 // pred_fallthru
      _
    // Predicated region
    $region10: #{tpu_custom_call.1} parent=1 // pred_check
      _
    $region11: #{tpu_custom_call.1} parent=1 // pred_check_branch
      %47 = sbr.rel (0) target = $region13
    $region12: #{tpu_custom_call.1} parent=1 // pred_region
      %s49 = ssub.s32 256, 256
      %50 = vsyncadd [#allocation8], %s49
      %s51 = sshll.u32 [#allocation9], 4
      %s52 = int_to_ptr.vmem [resolvable:$true] %s51
      %57 = dma.hbm_to_vmem [thread:$0]  %s3, 256, %s52, [#allocation8], 128, 128, 8
    $region13: #{tpu_custom_call.1} parent=1 // pred_fallthru
      _
    // Predicated region
    $region14: #{tpu_custom_call.1} parent=1 // pred_check
      _
    $region15: #{tpu_custom_call.1} parent=1 // pred_check_branch
      %59 = sbr.rel (0) target = $region17
    $region16: #{tpu_custom_call.1} parent=1 // pred_region
      %s61 = ssub.s32 512, 512
      %62 = vsyncadd [#allocation11], %s61
      %s63 = sshll.u32 [#allocation10], 4
      %s64 = int_to_ptr.vmem [resolvable:$true] %s63
      %69 = dma.hbm_to_vmem [thread:$0]  %s4, 512, %s64, [#allocation11], 128, 128, 8
    $region17: #{tpu_custom_call.1} parent=1 // pred_fallthru
      _
    // Predicated region
    $region18: #{tpu_custom_call.1} parent=1 // pred_check
      _
    $region19: #{tpu_custom_call.1} parent=1 // pred_check_branch
      %71 = sbr.rel (0) target = $region21
    $region20: #{tpu_custom_call.1} parent=1 // pred_region
      %s73 = ssub.s32 512, 512
      %74 = vsyncadd [#allocation11], %s73
      %s75 = sshll.u32 [#allocation12], 4
      %s76 = int_to_ptr.vmem [resolvable:$true] %s75
      %81 = dma.hbm_to_vmem [thread:$0]  %s5, 512, %s76, [#allocation11], 128, 128, 8
    $region21: #{tpu_custom_call.1} parent=1 // pred_fallthru
      _
    // Predicated region
    $region22: #{tpu_custom_call.1} parent=1 // pred_check
      _
    $region23: #{tpu_custom_call.1} parent=1 // pred_check_branch
      %83 = sbr.rel (0) target = $region25
    $region24: #{tpu_custom_call.1} parent=1 // pred_region
      %s85 = ssub.s32 512, 512
      %86 = vsyncadd [#allocation14], %s85
      %s87 = sshll.u32 [#allocation13], 4
      %s88 = int_to_ptr.vmem [resolvable:$true] %s87
      %93 = dma.hbm_to_vmem [thread:$0]  %s6, 512, %s88, [#allocation14], 128, 128, 8
    $region25: #{tpu_custom_call.1} parent=1 // pred_fallthru
      _
    // Predicated region
    $region26: #{tpu_custom_call.1} parent=1 // pred_check
      _
    $region27: #{tpu_custom_call.1} parent=1 // pred_check_branch
      %95 = sbr.rel (0) target = $region29
    $region28: #{tpu_custom_call.1} parent=1 // pred_region
      %s97 = ssub.s32 512, 512
      %98 = vsyncadd [#allocation14], %s97
      %s99 = sshll.u32 [#allocation15], 4
      %s100 = int_to_ptr.vmem [resolvable:$true] %s99
      %105 = dma.hbm_to_vmem [thread:$0]  %s7, 512, %s100, [#allocation14], 128, 128, 8
    $region29: #{tpu_custom_call.1} parent=1 // pred_fallthru
      _
    // Predicated region
    $region30: #{tpu_custom_call.1} parent=1 // pred_check
      _
    $region31: #{tpu_custom_call.1} parent=1 // pred_check_branch
      %107 = sbr.rel (0) target = $region33
    $region32: #{tpu_custom_call.1} parent=1 // pred_region
      %108 = dma.done [#allocation5], 256
    $region33: #{tpu_custom_call.1} parent=1 // pred_fallthru
      _
    // Predicated region
    $region34: #{tpu_custom_call.1} parent=1 // pred_check
      _
    $region35: #{tpu_custom_call.1} parent=1 // pred_check_branch
      %110 = sbr.rel (0) target = $region37
    $region36: #{tpu_custom_call.1} parent=1 // pred_region
      %111 = dma.done [#allocation8], 256
    $region37: #{tpu_custom_call.1} parent=1 // pred_fallthru
      _
    // Predicated region
    $region38: #{tpu_custom_call.1} parent=1 // pred_check
      _
    $region39: #{tpu_custom_call.1} parent=1 // pred_check_branch
      %113 = sbr.rel (0) target = $region41
    $region40: #{tpu_custom_call.1} parent=1 // pred_region
      %114 = dma.done [#allocation8], 256
    $region41: #{tpu_custom_call.1} parent=1 // pred_fallthru
      _
    // Predicated region
    $region42: #{tpu_custom_call.1} parent=1 // pred_check
      _
    $region43: #{tpu_custom_call.1} parent=1 // pred_check_branch
      %116 = sbr.rel (0) target = $region45
    $region44: #{tpu_custom_call.1} parent=1 // pred_region
      %117 = dma.done [#allocation11], 512
    $region45: #{tpu_custom_call.1} parent=1 // pred_fallthru
      _
    // Predicated region
    $region46: #{tpu_custom_call.1} parent=1 // pred_check
      _
    $region47: #{tpu_custom_call.1} parent=1 // pred_check_branch
      %119 = sbr.rel (0) target = $region49
    $region48: #{tpu_custom_call.1} parent=1 // pred_region
      %120 = dma.done [#allocation11], 512
    $region49: #{tpu_custom_call.1} parent=1 // pred_fallthru
      _
    // Predicated region
    $region50: #{tpu_custom_call.1} parent=1 // pred_check
      _
    $region51: #{tpu_custom_call.1} parent=1 // pred_check_branch
      %122 = sbr.rel (0) target = $region53
    $region52: #{tpu_custom_call.1} parent=1 // pred_region
      %123 = dma.done [#allocation14], 512
    $region53: #{tpu_custom_call.1} parent=1 // pred_fallthru
      _
    // Predicated region
    $region54: #{tpu_custom_call.1} parent=1 // pred_check
      _
    $region55: #{tpu_custom_call.1} parent=1 // pred_check_branch
      %125 = sbr.rel (0) target = $region57
    $region56: #{tpu_custom_call.1} parent=1 // pred_region
      %126 = dma.done [#allocation14], 512
    $region57: #{tpu_custom_call.1} parent=1 // pred_fallthru
      _
    %v127 = vld [vmem:[#allocation4] sm:$0xff]
    %v128 = vld [vmem:[#allocation4 + $0x8] sm:$0xff]
    %v129 = vld [vmem:[#allocation7] sm:$0xff]
    %v130 = vld [vmem:[#allocation7 + $0x8] sm:$0xff]
    %v131 = vld [vmem:[#allocation9] sm:$0xff]
    %v132 = vld [vmem:[#allocation9 + $0x8] sm:$0xff]
    %v133 = vld [vmem:[#allocation10] sm:$0xff]
    %v134 = vld [vmem:[#allocation10 + $0x8] sm:$0xff]
    %v135 = vld [vmem:[#allocation10 + $0x10] sm:$0xff]
    %v136 = vld [vmem:[#allocation10 + $0x18] sm:$0xff]
    %vm137 = vcmask 261120
    %v139 = vsel %vm137, %v127, 0
    %v142 = vsel %vm137, %v128, 0
    %144 = vmatprep.subr.mxu0 0.0
    %145 = vmatpush1.msra.mxu0 0.0
    %146 = vmatprep.subr.mxu0 0.0
    %147 = vmatpush1.msra.mxu0 0.0
    %148 = vmatprep.subr.mxu0 0.0
    %149 = vmatpush1.msra.mxu0 0.0
    %150 = vmatprep.subr.mxu0 0.0
    %151 = vmatpush1.msra.mxu0 0.0
    %152 = vmatprep.subr.mxu0 0.0
    %153 = vmatpush1.msra.mxu0 0.0
    %154 = vmatprep.subr.mxu0 0.0
    %155 = vmatpush1.msra.mxu0 0.0
    %156 = vmatprep.subr.mxu0 0.0
    %157 = vmatpush1.msra.mxu0 0.0
    %158 = vmatprep.subr.mxu0 0.0
    %159 = vmatpush1.msra.mxu0 0.0
    %160 = vmatprep.subr.mxu0 0.0
    %161 = vmatpush1.msra.mxu0 0.0
    %162 = vmatprep.subr.mxu0 0.0
    %163 = vmatpush1.msra.mxu0 0.0
    %164 = vmatprep.subr.mxu0 0.0
    %165 = vmatpush1.msra.mxu0 0.0
    %166 = vmatprep.subr.mxu0 0.0
    %167 = vmatpush1.msra.mxu0 0.0
    %168 = vmatprep.subr.mxu0 0.0
    %169 = vmatpush1.msra.mxu0 %v136
    %170 = vmatprep.subr.mxu0 0.0
    %171 = vmatpush1.msra.mxu0 %v135
    %172 = vmatprep.subr.mxu0 0.0
    %173 = vmatpush1.msra.mxu0 %v134
    %174 = vmatprep.subr.mxu0 0.0
    %175 = vmatpush1.msra.mxu0 %v133
    %176 = vmatprep.subr.mxu0 0.0
    %177 = vmatpush2.msra.mxu0 0.0
    %178 = vmatprep.subr.mxu0 0.0
    %179 = vmatpush2.msra.mxu0 0.0
    %180 = vmatprep.subr.mxu0 0.0
    %181 = vmatpush2.msra.mxu0 0.0
    %182 = vmatprep.subr.mxu0 0.0
    %183 = vmatpush2.msra.mxu0 0.0
    %184 = vmatprep.subr.mxu0 0.0
    %185 = vmatpush2.msra.mxu0 0.0
    %186 = vmatprep.subr.mxu0 0.0
    %187 = vmatpush2.msra.mxu0 0.0
    %188 = vmatprep.subr.mxu0 0.0
    %189 = vmatpush2.msra.mxu0 0.0
    %190 = vmatprep.subr.mxu0 0.0
    %191 = vmatpush2.msra.mxu0 0.0
    %192 = vmatprep.subr.mxu0 0.0
    %193 = vmatpush2.msra.mxu0 0.0
    %194 = vmatprep.subr.mxu0 0.0
    %195 = vmatpush2.msra.mxu0 0.0
    %196 = vmatprep.subr.mxu0 0.0
    %197 = vmatpush2.msra.mxu0 0.0
    %198 = vmatprep.subr.mxu0 0.0
    %199 = vmatpush2.msra.mxu0 0.0
    %200 = vmatprep.subr.mxu0 0.0
    %201 = vmatpush2.msra.mxu0 0.0
    %202 = vmatprep.subr.mxu0 0.0
    %203 = vmatpush2.msra.mxu0 0.0
    %204 = vmatprep.subr.mxu0 0.0
    %205 = vmatpush2.msra.mxu0 0.0
    %206 = vmatprep.subr.mxu0 0.0
    %207 = vmatpush2.msra.mxu0 0.0
    %208 = vmatprep.mubr.f32.mxu0 0.0
    %209 = vmatmul.mubr.f32.gmra.mxu0 %v139
    %v210 = vpop.f32.mrf.mxu0
    %v211 = vadd.f32 0.0, %v210
    %v212 = vpop.f32.mrf.mxu0
    %213 = vmatprep.mubr.f32.mxu0 0.0
    %214 = vmatmul.mubr.f32.gmra.mxu0 %v142
    %v215 = vpop.f32.mrf.mxu0
    %v216 = vadd.f32 0.0, %v215
    %v217 = vpop.f32.mrf.mxu0
    %218 = vdwg.mxu0
    %v219 = vld [vmem:[#allocation12] sm:$0xff]
    %v220 = vld [vmem:[#allocation12 + $0x8] sm:$0xff]
    %v221 = vld [vmem:[#allocation12 + $0x10] sm:$0xff]
    %v222 = vld [vmem:[#allocation12 + $0x18] sm:$0xff]
    %v224 = vsel %vm137, %v129, 0
    %v227 = vsel %vm137, %v130, 0
    %229 = vmatprep.subr.mxu0 0.0
    %230 = vmatpush1.msra.mxu0 0.0
    %231 = vmatprep.subr.mxu0 0.0
    %232 = vmatpush1.msra.mxu0 0.0
    %233 = vmatprep.subr.mxu0 0.0
    %234 = vmatpush1.msra.mxu0 0.0
    %235 = vmatprep.subr.mxu0 0.0
    %236 = vmatpush1.msra.mxu0 0.0
    %237 = vmatprep.subr.mxu0 0.0
    %238 = vmatpush1.msra.mxu0 0.0
    %239 = vmatprep.subr.mxu0 0.0
    %240 = vmatpush1.msra.mxu0 0.0
    %241 = vmatprep.subr.mxu0 0.0
    %242 = vmatpush1.msra.mxu0 0.0
    %243 = vmatprep.subr.mxu0 0.0
    %244 = vmatpush1.msra.mxu0 0.0
    %245 = vmatprep.subr.mxu0 0.0
    %246 = vmatpush1.msra.mxu0 0.0
    %247 = vmatprep.subr.mxu0 0.0
    %248 = vmatpush1.msra.mxu0 0.0
    %249 = vmatprep.subr.mxu0 0.0
    %250 = vmatpush1.msra.mxu0 0.0
    %251 = vmatprep.subr.mxu0 0.0
    %252 = vmatpush1.msra.mxu0 0.0
    %253 = vmatprep.subr.mxu0 0.0
    %254 = vmatpush1.msra.mxu0 %v222
    %255 = vmatprep.subr.mxu0 0.0
    %256 = vmatpush1.msra.mxu0 %v221
    %257 = vmatprep.subr.mxu0 0.0
    %258 = vmatpush1.msra.mxu0 %v220
    %259 = vmatprep.subr.mxu0 0.0
    %260 = vmatpush1.msra.mxu0 %v219
    %261 = vmatprep.subr.mxu0 0.0
    %262 = vmatpush2.msra.mxu0 0.0
    %263 = vmatprep.subr.mxu0 0.0
    %264 = vmatpush2.msra.mxu0 0.0
    %265 = vmatprep.subr.mxu0 0.0
    %266 = vmatpush2.msra.mxu0 0.0
    %267 = vmatprep.subr.mxu0 0.0
    %268 = vmatpush2.msra.mxu0 0.0
    %269 = vmatprep.subr.mxu0 0.0
    %270 = vmatpush2.msra.mxu0 0.0
    %271 = vmatprep.subr.mxu0 0.0
    %272 = vmatpush2.msra.mxu0 0.0
    %273 = vmatprep.subr.mxu0 0.0
    %274 = vmatpush2.msra.mxu0 0.0
    %275 = vmatprep.subr.mxu0 0.0
    %276 = vmatpush2.msra.mxu0 0.0
    %277 = vmatprep.subr.mxu0 0.0
    %278 = vmatpush2.msra.mxu0 0.0
    %279 = vmatprep.subr.mxu0 0.0
    %280 = vmatpush2.msra.mxu0 0.0
    %281 = vmatprep.subr.mxu0 0.0
    %282 = vmatpush2.msra.mxu0 0.0
    %283 = vmatprep.subr.mxu0 0.0
    %284 = vmatpush2.msra.mxu0 0.0
    %285 = vmatprep.subr.mxu0 0.0
    %286 = vmatpush2.msra.mxu0 0.0
    %287 = vmatprep.subr.mxu0 0.0
    %288 = vmatpush2.msra.mxu0 0.0
    %289 = vmatprep.subr.mxu0 0.0
    %290 = vmatpush2.msra.mxu0 0.0
    %291 = vmatprep.subr.mxu0 0.0
    %292 = vmatpush2.msra.mxu0 0.0
    %293 = vmatprep.mubr.f32.mxu0 0.0
    %294 = vmatmul.mubr.f32.gmra.mxu0 %v224
    %v295 = vpop.f32.mrf.mxu0
    %v296 = vadd.f32 0.0, %v295
    %v297 = vpop.f32.mrf.mxu0
    %298 = vmatprep.mubr.f32.mxu0 0.0
    %299 = vmatmul.mubr.f32.gmra.mxu0 %v227
    %v300 = vpop.f32.mrf.mxu0
    %v301 = vadd.f32 0.0, %v300
    %v302 = vpop.f32.mrf.mxu0
    %303 = vdwg.mxu0
    %v304 = vld [vmem:[#allocation13] sm:$0xff]
    %v305 = vld [vmem:[#allocation13 + $0x8] sm:$0xff]
    %v306 = vld [vmem:[#allocation13 + $0x10] sm:$0xff]
    %v307 = vld [vmem:[#allocation13 + $0x18] sm:$0xff]
    %v309 = vsel %vm137, %v131, 0
    %v312 = vsel %vm137, %v132, 0
    %314 = vmatprep.subr.mxu0 0.0
    %315 = vmatpush1.msra.mxu0 0.0
    %316 = vmatprep.subr.mxu0 0.0
    %317 = vmatpush1.msra.mxu0 0.0
    %318 = vmatprep.subr.mxu0 0.0
    %319 = vmatpush1.msra.mxu0 0.0
    %320 = vmatprep.subr.mxu0 0.0
    %321 = vmatpush1.msra.mxu0 0.0
    %322 = vmatprep.subr.mxu0 0.0
    %323 = vmatpush1.msra.mxu0 0.0
    %324 = vmatprep.subr.mxu0 0.0
    %325 = vmatpush1.msra.mxu0 0.0
    %326 = vmatprep.subr.mxu0 0.0
    %327 = vmatpush1.msra.mxu0 0.0
    %328 = vmatprep.subr.mxu0 0.0
    %329 = vmatpush1.msra.mxu0 0.0
    %330 = vmatprep.subr.mxu0 0.0
    %331 = vmatpush1.msra.mxu0 0.0
    %332 = vmatprep.subr.mxu0 0.0
    %333 = vmatpush1.msra.mxu0 0.0
    %334 = vmatprep.subr.mxu0 0.0
    %335 = vmatpush1.msra.mxu0 0.0
    %336 = vmatprep.subr.mxu0 0.0
    %337 = vmatpush1.msra.mxu0 0.0
    %338 = vmatprep.subr.mxu0 0.0
    %339 = vmatpush1.msra.mxu0 %v307
    %340 = vmatprep.subr.mxu0 0.0
    %341 = vmatpush1.msra.mxu0 %v306
    %342 = vmatprep.subr.mxu0 0.0
    %343 = vmatpush1.msra.mxu0 %v305
    %344 = vmatprep.subr.mxu0 0.0
    %345 = vmatpush1.msra.mxu0 %v304
    %346 = vmatprep.subr.mxu0 0.0
    %347 = vmatpush2.msra.mxu0 0.0
    %348 = vmatprep.subr.mxu0 0.0
    %349 = vmatpush2.msra.mxu0 0.0
    %350 = vmatprep.subr.mxu0 0.0
    %351 = vmatpush2.msra.mxu0 0.0
    %352 = vmatprep.subr.mxu0 0.0
    %353 = vmatpush2.msra.mxu0 0.0
    %354 = vmatprep.subr.mxu0 0.0
    %355 = vmatpush2.msra.mxu0 0.0
    %356 = vmatprep.subr.mxu0 0.0
    %357 = vmatpush2.msra.mxu0 0.0
    %358 = vmatprep.subr.mxu0 0.0
    %359 = vmatpush2.msra.mxu0 0.0
    %360 = vmatprep.subr.mxu0 0.0
    %361 = vmatpush2.msra.mxu0 0.0
    %362 = vmatprep.subr.mxu0 0.0
    %363 = vmatpush2.msra.mxu0 0.0
    %364 = vmatprep.subr.mxu0 0.0
    %365 = vmatpush2.msra.mxu0 0.0
    %366 = vmatprep.subr.mxu0 0.0
    %367 = vmatpush2.msra.mxu0 0.0
    %368 = vmatprep.subr.mxu0 0.0
    %369 = vmatpush2.msra.mxu0 0.0
    %370 = vmatprep.subr.mxu0 0.0
    %371 = vmatpush2.msra.mxu0 0.0
    %372 = vmatprep.subr.mxu0 0.0
    %373 = vmatpush2.msra.mxu0 0.0
    %374 = vmatprep.subr.mxu0 0.0
    %375 = vmatpush2.msra.mxu0 0.0
    %376 = vmatprep.subr.mxu0 0.0
    %377 = vmatpush2.msra.mxu0 0.0
    %378 = vmatprep.mubr.f32.mxu0 0.0
    %379 = vmatmul.mubr.f32.gmra.mxu0 %v309
    %v380 = vpop.f32.mrf.mxu0
    %v381 = vadd.f32 0.0, %v380
    %v382 = vpop.f32.mrf.mxu0
    %383 = vmatprep.mubr.f32.mxu0 0.0
    %384 = vmatmul.mubr.f32.gmra.mxu0 %v312
    %v385 = vpop.f32.mrf.mxu0
    %v386 = vadd.f32 0.0, %v385
    %v387 = vpop.f32.mrf.mxu0
    %388 = vdwg.mxu0
    %v389 = vlaneseq
    %v390 = vand.u32 %v389, 127
    %s391 = sld [smem:[#allocation3]]
    %v392 = vstv %s391
    %vm393 = vcmp.lt.s32.totalorder %v390, %v392
    %vm394 = vcmask 64512
    %v396 = vsel %vm394, %v211, 0
    %v399 = vsel %vm394, %v296, 0
    %401 = vmatprep.subr.mxu0 0.0
    %402 = vmatpush1.xpose.msra.mxu0 0.0
    %403 = vmatprep.subr.mxu0 0.0
    %404 = vmatpush1.xpose.msra.mxu0 0.0
    %405 = vmatprep.subr.mxu0 0.0
    %406 = vmatpush1.xpose.msra.mxu0 0.0
    %407 = vmatprep.subr.mxu0 0.0
    %408 = vmatpush1.xpose.msra.mxu0 0.0
    %409 = vmatprep.subr.mxu0 0.0
    %410 = vmatpush1.xpose.msra.mxu0 0.0
    %411 = vmatprep.subr.mxu0 0.0
    %412 = vmatpush1.xpose.msra.mxu0 0.0
    %413 = vmatprep.subr.mxu0 0.0
    %414 = vmatpush1.xpose.msra.mxu0 0.0
    %415 = vmatprep.subr.mxu0 0.0
    %416 = vmatpush1.xpose.msra.mxu0 0.0
    %417 = vmatprep.subr.mxu0 0.0
    %418 = vmatpush1.xpose.msra.mxu0 0.0
    %419 = vmatprep.subr.mxu0 0.0
    %420 = vmatpush1.xpose.msra.mxu0 0.0
    %421 = vmatprep.subr.mxu0 0.0
    %422 = vmatpush1.xpose.msra.mxu0 0.0
    %423 = vmatprep.subr.mxu0 0.0
    %424 = vmatpush1.xpose.msra.mxu0 0.0
    %425 = vmatprep.subr.mxu0 0.0
    %426 = vmatpush1.xpose.msra.mxu0 0.0
    %427 = vmatprep.subr.mxu0 0.0
    %428 = vmatpush1.xpose.msra.mxu0 0.0
    %429 = vmatprep.subr.mxu0 0.0
    %430 = vmatpush1.xpose.msra.mxu0 0.0
    %431 = vmatprep.subr.mxu0 0.0
    %432 = vmatpush1.xpose.msra.mxu0 %v399
    %433 = vmatprep.subr.mxu0 0.0
    %434 = vmatpush2.xpose.msra.mxu0 0.0
    %435 = vmatprep.subr.mxu0 0.0
    %436 = vmatpush2.xpose.msra.mxu0 0.0
    %437 = vmatprep.subr.mxu0 0.0
    %438 = vmatpush2.xpose.msra.mxu0 0.0
    %439 = vmatprep.subr.mxu0 0.0
    %440 = vmatpush2.xpose.msra.mxu0 0.0
    %441 = vmatprep.subr.mxu0 0.0
    %442 = vmatpush2.xpose.msra.mxu0 0.0
    %443 = vmatprep.subr.mxu0 0.0
    %444 = vmatpush2.xpose.msra.mxu0 0.0
    %445 = vmatprep.subr.mxu0 0.0
    %446 = vmatpush2.xpose.msra.mxu0 0.0
    %447 = vmatprep.subr.mxu0 0.0
    %448 = vmatpush2.xpose.msra.mxu0 0.0
    %449 = vmatprep.subr.mxu0 0.0
    %450 = vmatpush2.xpose.msra.mxu0 0.0
    %451 = vmatprep.subr.mxu0 0.0
    %452 = vmatpush2.xpose.msra.mxu0 0.0
    %453 = vmatprep.subr.mxu0 0.0
    %454 = vmatpush2.xpose.msra.mxu0 0.0
    %455 = vmatprep.subr.mxu0 0.0
    %456 = vmatpush2.xpose.msra.mxu0 0.0
    %457 = vmatprep.subr.mxu0 0.0
    %458 = vmatpush2.xpose.msra.mxu0 0.0
    %459 = vmatprep.subr.mxu0 0.0
    %460 = vmatpush2.xpose.msra.mxu0 0.0
    %461 = vmatprep.subr.mxu0 0.0
    %462 = vmatpush2.xpose.msra.mxu0 0.0
    %463 = vmatprep.subr.mxu0 0.0
    %464 = vmatpush2.xpose.msra.mxu0 0.0
    %465 = vmatprep.mubr.f32.mxu0 0.0
    %466 = vmatmul.mubr.f32.gmra.mxu0 %v396
    %v467 = vpop.f32.mrf.mxu0
    %v468 = vadd.f32 0.0, %v467
    %v469 = vpop.f32.mrf.mxu0
    %470 = vdwg.mxu0
    %v471 = vsel %vm393, %v468, -1000000.0
    %v472 = vsel %vm394, %v471, -inf
    %473 = vmax.xlane.f32.xlu0 %v472
    %v474 = vpop.xlane.xlu0 %473
    %v475 = vsub.f32 %v471, %v474
    %v476 = vmul.f32 %v475, 1.442695
    %v477 = vpow.pop %v476
    %v478 = vsel %vm394, %v477, 0.0
    %479 = vadd.xlane.f32.xlu0 %v478
    %v480 = vpop.xlane.xlu0 %479
    %v481 = vrcp.pop %v480
    %v482 = vmul.f32 %v477, %v481
    %v484 = vsel %vm394, %v482, 0
    %486 = vmatprep.subr.mxu0 0.0
    %487 = vmatpush1.msra.mxu0 0.0
    %488 = vmatprep.subr.mxu0 0.0
    %489 = vmatpush1.msra.mxu0 0.0
    %490 = vmatprep.subr.mxu0 0.0
    %491 = vmatpush1.msra.mxu0 0.0
    %492 = vmatprep.subr.mxu0 0.0
    %493 = vmatpush1.msra.mxu0 0.0
    %494 = vmatprep.subr.mxu0 0.0
    %495 = vmatpush1.msra.mxu0 0.0
    %496 = vmatprep.subr.mxu0 0.0
    %497 = vmatpush1.msra.mxu0 0.0
    %498 = vmatprep.subr.mxu0 0.0
    %499 = vmatpush1.msra.mxu0 0.0
    %500 = vmatprep.subr.mxu0 0.0
    %501 = vmatpush1.msra.mxu0 0.0
    %502 = vmatprep.subr.mxu0 0.0
    %503 = vmatpush1.msra.mxu0 0.0
    %504 = vmatprep.subr.mxu0 0.0
    %505 = vmatpush1.msra.mxu0 0.0
    %506 = vmatprep.subr.mxu0 0.0
    %507 = vmatpush1.msra.mxu0 0.0
    %508 = vmatprep.subr.mxu0 0.0
    %509 = vmatpush1.msra.mxu0 0.0
    %510 = vmatprep.subr.mxu0 0.0
    %511 = vmatpush1.msra.mxu0 0.0
    %512 = vmatprep.subr.mxu0 0.0
    %513 = vmatpush1.msra.mxu0 0.0
    %514 = vmatprep.subr.mxu0 0.0
    %515 = vmatpush1.msra.mxu0 0.0
    %516 = vmatprep.subr.mxu0 0.0
    %517 = vmatpush1.msra.mxu0 %v381
    %518 = vmatprep.subr.mxu0 0.0
    %519 = vmatpush2.msra.mxu0 0.0
    %520 = vmatprep.subr.mxu0 0.0
    %521 = vmatpush2.msra.mxu0 0.0
    %522 = vmatprep.subr.mxu0 0.0
    %523 = vmatpush2.msra.mxu0 0.0
    %524 = vmatprep.subr.mxu0 0.0
    %525 = vmatpush2.msra.mxu0 0.0
    %526 = vmatprep.subr.mxu0 0.0
    %527 = vmatpush2.msra.mxu0 0.0
    %528 = vmatprep.subr.mxu0 0.0
    %529 = vmatpush2.msra.mxu0 0.0
    %530 = vmatprep.subr.mxu0 0.0
    %531 = vmatpush2.msra.mxu0 0.0
    %532 = vmatprep.subr.mxu0 0.0
    %533 = vmatpush2.msra.mxu0 0.0
    %534 = vmatprep.subr.mxu0 0.0
    %535 = vmatpush2.msra.mxu0 0.0
    %536 = vmatprep.subr.mxu0 0.0
    %537 = vmatpush2.msra.mxu0 0.0
    %538 = vmatprep.subr.mxu0 0.0
    %539 = vmatpush2.msra.mxu0 0.0
    %540 = vmatprep.subr.mxu0 0.0
    %541 = vmatpush2.msra.mxu0 0.0
    %542 = vmatprep.subr.mxu0 0.0
    %543 = vmatpush2.msra.mxu0 0.0
    %544 = vmatprep.subr.mxu0 0.0
    %545 = vmatpush2.msra.mxu0 0.0
    %546 = vmatprep.subr.mxu0 0.0
    %547 = vmatpush2.msra.mxu0 0.0
    %548 = vmatprep.subr.mxu0 0.0
    %549 = vmatpush2.msra.mxu0 0.0
    %550 = vmatprep.mubr.f32.mxu0 0.0
    %551 = vmatmul.mubr.f32.gmra.mxu0 %v484
    %v552 = vpop.f32.mrf.mxu0
    %v553 = vadd.f32 0.0, %v552
    %v554 = vpop.f32.mrf.mxu0
    %555 = vdwg.mxu0
    %556 = vrot.lane.b32.xlu0 %v211, 120
    %v557 = vpop.permute.xlu0 %556
    %558 = vrot.lane.b32.xlu0 %v296, 120
    %v559 = vpop.permute.xlu0 %558
    %v560 = vsel %vm394, %v557, 0
    %v562 = vsel %vm394, %v559, 0
    %564 = vmatprep.subr.mxu0 0.0
    %565 = vmatpush1.xpose.msra.mxu0 0.0
    %566 = vmatprep.subr.mxu0 0.0
    %567 = vmatpush1.xpose.msra.mxu0 0.0
    %568 = vmatprep.subr.mxu0 0.0
    %569 = vmatpush1.xpose.msra.mxu0 0.0
    %570 = vmatprep.subr.mxu0 0.0
    %571 = vmatpush1.xpose.msra.mxu0 0.0
    %572 = vmatprep.subr.mxu0 0.0
    %573 = vmatpush1.xpose.msra.mxu0 0.0
    %574 = vmatprep.subr.mxu0 0.0
    %575 = vmatpush1.xpose.msra.mxu0 0.0
    %576 = vmatprep.subr.mxu0 0.0
    %577 = vmatpush1.xpose.msra.mxu0 0.0
    %578 = vmatprep.subr.mxu0 0.0
    %579 = vmatpush1.xpose.msra.mxu0 0.0
    %580 = vmatprep.subr.mxu0 0.0
    %581 = vmatpush1.xpose.msra.mxu0 0.0
    %582 = vmatprep.subr.mxu0 0.0
    %583 = vmatpush1.xpose.msra.mxu0 0.0
    %584 = vmatprep.subr.mxu0 0.0
    %585 = vmatpush1.xpose.msra.mxu0 0.0
    %586 = vmatprep.subr.mxu0 0.0
    %587 = vmatpush1.xpose.msra.mxu0 0.0
    %588 = vmatprep.subr.mxu0 0.0
    %589 = vmatpush1.xpose.msra.mxu0 0.0
    %590 = vmatprep.subr.mxu0 0.0
    %591 = vmatpush1.xpose.msra.mxu0 0.0
    %592 = vmatprep.subr.mxu0 0.0
    %593 = vmatpush1.xpose.msra.mxu0 0.0
    %594 = vmatprep.subr.mxu0 0.0
    %595 = vmatpush1.xpose.msra.mxu0 %v562
    %596 = vmatprep.subr.mxu0 0.0
    %597 = vmatpush2.xpose.msra.mxu0 0.0
    %598 = vmatprep.subr.mxu0 0.0
    %599 = vmatpush2.xpose.msra.mxu0 0.0
    %600 = vmatprep.subr.mxu0 0.0
    %601 = vmatpush2.xpose.msra.mxu0 0.0
    %602 = vmatprep.subr.mxu0 0.0
    %603 = vmatpush2.xpose.msra.mxu0 0.0
    %604 = vmatprep.subr.mxu0 0.0
    %605 = vmatpush2.xpose.msra.mxu0 0.0
    %606 = vmatprep.subr.mxu0 0.0
    %607 = vmatpush2.xpose.msra.mxu0 0.0
    %608 = vmatprep.subr.mxu0 0.0
    %609 = vmatpush2.xpose.msra.mxu0 0.0
    %610 = vmatprep.subr.mxu0 0.0
    %611 = vmatpush2.xpose.msra.mxu0 0.0
    %612 = vmatprep.subr.mxu0 0.0
    %613 = vmatpush2.xpose.msra.mxu0 0.0
    %614 = vmatprep.subr.mxu0 0.0
    %615 = vmatpush2.xpose.msra.mxu0 0.0
    %616 = vmatprep.subr.mxu0 0.0
    %617 = vmatpush2.xpose.msra.mxu0 0.0
    %618 = vmatprep.subr.mxu0 0.0
    %619 = vmatpush2.xpose.msra.mxu0 0.0
    %620 = vmatprep.subr.mxu0 0.0
    %621 = vmatpush2.xpose.msra.mxu0 0.0
    %622 = vmatprep.subr.mxu0 0.0
    %623 = vmatpush2.xpose.msra.mxu0 0.0
    %624 = vmatprep.subr.mxu0 0.0
    %625 = vmatpush2.xpose.msra.mxu0 0.0
    %626 = vmatprep.subr.mxu0 0.0
    %627 = vmatpush2.xpose.msra.mxu0 0.0
    %628 = vmatprep.mubr.f32.mxu0 0.0
    %629 = vmatmul.mubr.f32.gmra.mxu0 %v560
    %v630 = vpop.f32.mrf.mxu0
    %v631 = vadd.f32 0.0, %v630
    %v632 = vpop.f32.mrf.mxu0
    %633 = vdwg.mxu0
    %v634 = vsel %vm393, %v631, -1000000.0
    %v635 = vsel %vm394, %v634, -inf
    %636 = vmax.xlane.f32.xlu0 %v635
    %v637 = vpop.xlane.xlu0 %636
    %v638 = vsub.f32 %v634, %v637
    %v639 = vmul.f32 %v638, 1.442695
    %v640 = vpow.pop %v639
    %v641 = vsel %vm394, %v640, 0.0
    %642 = vadd.xlane.f32.xlu0 %v641
    %v643 = vpop.xlane.xlu0 %642
    %v644 = vrcp.pop %v643
    %v645 = vmul.f32 %v640, %v644
    %647 = vrot.lane.b32.xlu0 %v381, 120
    %v648 = vpop.permute.xlu0 %647
    %v651 = vsel %vm394, %v645, 0
    %653 = vmatprep.subr.mxu0 0.0
    %654 = vmatpush1.msra.mxu0 0.0
    %655 = vmatprep.subr.mxu0 0.0
    %656 = vmatpush1.msra.mxu0 0.0
    %657 = vmatprep.subr.mxu0 0.0
    %658 = vmatpush1.msra.mxu0 0.0
    %659 = vmatprep.subr.mxu0 0.0
    %660 = vmatpush1.msra.mxu0 0.0
    %661 = vmatprep.subr.mxu0 0.0
    %662 = vmatpush1.msra.mxu0 0.0
    %663 = vmatprep.subr.mxu0 0.0
    %664 = vmatpush1.msra.mxu0 0.0
    %665 = vmatprep.subr.mxu0 0.0
    %666 = vmatpush1.msra.mxu0 0.0
    %667 = vmatprep.subr.mxu0 0.0
    %668 = vmatpush1.msra.mxu0 0.0
    %669 = vmatprep.subr.mxu0 0.0
    %670 = vmatpush1.msra.mxu0 0.0
    %671 = vmatprep.subr.mxu0 0.0
    %672 = vmatpush1.msra.mxu0 0.0
    %673 = vmatprep.subr.mxu0 0.0
    %674 = vmatpush1.msra.mxu0 0.0
    %675 = vmatprep.subr.mxu0 0.0
    %676 = vmatpush1.msra.mxu0 0.0
    %677 = vmatprep.subr.mxu0 0.0
    %678 = vmatpush1.msra.mxu0 0.0
    %679 = vmatprep.subr.mxu0 0.0
    %680 = vmatpush1.msra.mxu0 0.0
    %681 = vmatprep.subr.mxu0 0.0
    %682 = vmatpush1.msra.mxu0 0.0
    %683 = vmatprep.subr.mxu0 0.0
    %684 = vmatpush1.msra.mxu0 %v648
    %685 = vmatprep.subr.mxu0 0.0
    %686 = vmatpush2.msra.mxu0 0.0
    %687 = vmatprep.subr.mxu0 0.0
    %688 = vmatpush2.msra.mxu0 0.0
    %689 = vmatprep.subr.mxu0 0.0
    %690 = vmatpush2.msra.mxu0 0.0
    %691 = vmatprep.subr.mxu0 0.0
    %692 = vmatpush2.msra.mxu0 0.0
    %693 = vmatprep.subr.mxu0 0.0
    %694 = vmatpush2.msra.mxu0 0.0
    %695 = vmatprep.subr.mxu0 0.0
    %696 = vmatpush2.msra.mxu0 0.0
    %697 = vmatprep.subr.mxu0 0.0
    %698 = vmatpush2.msra.mxu0 0.0
    %699 = vmatprep.subr.mxu0 0.0
    %700 = vmatpush2.msra.mxu0 0.0
    %701 = vmatprep.subr.mxu0 0.0
    %702 = vmatpush2.msra.mxu0 0.0
    %703 = vmatprep.subr.mxu0 0.0
    %704 = vmatpush2.msra.mxu0 0.0
    %705 = vmatprep.subr.mxu0 0.0
    %706 = vmatpush2.msra.mxu0 0.0
    %707 = vmatprep.subr.mxu0 0.0
    %708 = vmatpush2.msra.mxu0 0.0
    %709 = vmatprep.subr.mxu0 0.0
    %710 = vmatpush2.msra.mxu0 0.0
    %711 = vmatprep.subr.mxu0 0.0
    %712 = vmatpush2.msra.mxu0 0.0
    %713 = vmatprep.subr.mxu0 0.0
    %714 = vmatpush2.msra.mxu0 0.0
    %715 = vmatprep.subr.mxu0 0.0
    %716 = vmatpush2.msra.mxu0 0.0
    %717 = vmatprep.mubr.f32.mxu0 0.0
    %718 = vmatmul.mubr.f32.gmra.mxu0 %v651
    %v719 = vpop.f32.mrf.mxu0
    %v720 = vadd.f32 0.0, %v719
    %v721 = vpop.f32.mrf.mxu0
    %722 = vdwg.mxu0
    %723 = vrot.lane.b32.xlu0 %v211, 112
    %v724 = vpop.permute.xlu0 %723
    %725 = vrot.lane.b32.xlu0 %v296, 112
    %v726 = vpop.permute.xlu0 %725
    %v727 = vsel %vm394, %v724, 0
    %v729 = vsel %vm394, %v726, 0
    %731 = vmatprep.subr.mxu0 0.0
    %732 = vmatpush1.xpose.msra.mxu0 0.0
    %733 = vmatprep.subr.mxu0 0.0
    %734 = vmatpush1.xpose.msra.mxu0 0.0
    %735 = vmatprep.subr.mxu0 0.0
    %736 = vmatpush1.xpose.msra.mxu0 0.0
    %737 = vmatprep.subr.mxu0 0.0
    %738 = vmatpush1.xpose.msra.mxu0 0.0
    %739 = vmatprep.subr.mxu0 0.0
    %740 = vmatpush1.xpose.msra.mxu0 0.0
    %741 = vmatprep.subr.mxu0 0.0
    %742 = vmatpush1.xpose.msra.mxu0 0.0
    %743 = vmatprep.subr.mxu0 0.0
    %744 = vmatpush1.xpose.msra.mxu0 0.0
    %745 = vmatprep.subr.mxu0 0.0
    %746 = vmatpush1.xpose.msra.mxu0 0.0
    %747 = vmatprep.subr.mxu0 0.0
    %748 = vmatpush1.xpose.msra.mxu0 0.0
    %749 = vmatprep.subr.mxu0 0.0
    %750 = vmatpush1.xpose.msra.mxu0 0.0
    %751 = vmatprep.subr.mxu0 0.0
    %752 = vmatpush1.xpose.msra.mxu0 0.0
    %753 = vmatprep.subr.mxu0 0.0
    %754 = vmatpush1.xpose.msra.mxu0 0.0
    %755 = vmatprep.subr.mxu0 0.0
    %756 = vmatpush1.xpose.msra.mxu0 0.0
    %757 = vmatprep.subr.mxu0 0.0
    %758 = vmatpush1.xpose.msra.mxu0 0.0
    %759 = vmatprep.subr.mxu0 0.0
    %760 = vmatpush1.xpose.msra.mxu0 0.0
    %761 = vmatprep.subr.mxu0 0.0
    %762 = vmatpush1.xpose.msra.mxu0 %v729
    %763 = vmatprep.subr.mxu0 0.0
    %764 = vmatpush2.xpose.msra.mxu0 0.0
    %765 = vmatprep.subr.mxu0 0.0
    %766 = vmatpush2.xpose.msra.mxu0 0.0
    %767 = vmatprep.subr.mxu0 0.0
    %768 = vmatpush2.xpose.msra.mxu0 0.0
    %769 = vmatprep.subr.mxu0 0.0
    %770 = vmatpush2.xpose.msra.mxu0 0.0
    %771 = vmatprep.subr.mxu0 0.0
    %772 = vmatpush2.xpose.msra.mxu0 0.0
    %773 = vmatprep.subr.mxu0 0.0
    %774 = vmatpush2.xpose.msra.mxu0 0.0
    %775 = vmatprep.subr.mxu0 0.0
    %776 = vmatpush2.xpose.msra.mxu0 0.0
    %777 = vmatprep.subr.mxu0 0.0
    %778 = vmatpush2.xpose.msra.mxu0 0.0
    %779 = vmatprep.subr.mxu0 0.0
    %780 = vmatpush2.xpose.msra.mxu0 0.0
    %781 = vmatprep.subr.mxu0 0.0
    %782 = vmatpush2.xpose.msra.mxu0 0.0
    %783 = vmatprep.subr.mxu0 0.0
    %784 = vmatpush2.xpose.msra.mxu0 0.0
    %785 = vmatprep.subr.mxu0 0.0
    %786 = vmatpush2.xpose.msra.mxu0 0.0
    %787 = vmatprep.subr.mxu0 0.0
    %788 = vmatpush2.xpose.msra.mxu0 0.0
    %789 = vmatprep.subr.mxu0 0.0
    %790 = vmatpush2.xpose.msra.mxu0 0.0
    %791 = vmatprep.subr.mxu0 0.0
    %792 = vmatpush2.xpose.msra.mxu0 0.0
    %793 = vmatprep.subr.mxu0 0.0
    %794 = vmatpush2.xpose.msra.mxu0 0.0
    %795 = vmatprep.mubr.f32.mxu0 0.0
    %796 = vmatmul.mubr.f32.gmra.mxu0 %v727
    %v797 = vpop.f32.mrf.mxu0
    %v798 = vadd.f32 0.0, %v797
    %v799 = vpop.f32.mrf.mxu0
    %800 = vdwg.mxu0
    %v801 = vsel %vm393, %v798, -1000000.0
    %v802 = vsel %vm394, %v801, -inf
    %803 = vmax.xlane.f32.xlu0 %v802
    %v804 = vpop.xlane.xlu0 %803
    %v805 = vsub.f32 %v801, %v804
    %v806 = vmul.f32 %v805, 1.442695
    %v807 = vpow.pop %v806
    %v808 = vsel %vm394, %v807, 0.0
    %809 = vadd.xlane.f32.xlu0 %v808
    %v810 = vpop.xlane.xlu0 %809
    %v811 = vrcp.pop %v810
    %v812 = vmul.f32 %v807, %v811
    %813 = vrot.lane.b32.xlu0 %v381, 112
    %v814 = vpop.permute.xlu0 %813
    %v817 = vsel %vm394, %v812, 0
    %819 = vmatprep.subr.mxu0 0.0
    %820 = vmatpush1.msra.mxu0 0.0
    %821 = vmatprep.subr.mxu0 0.0
    %822 = vmatpush1.msra.mxu0 0.0
    %823 = vmatprep.subr.mxu0 0.0
    %824 = vmatpush1.msra.mxu0 0.0
    %825 = vmatprep.subr.mxu0 0.0
    %826 = vmatpush1.msra.mxu0 0.0
    %827 = vmatprep.subr.mxu0 0.0
    %828 = vmatpush1.msra.mxu0 0.0
    %829 = vmatprep.subr.mxu0 0.0
    %830 = vmatpush1.msra.mxu0 0.0
    %831 = vmatprep.subr.mxu0 0.0
    %832 = vmatpush1.msra.mxu0 0.0
    %833 = vmatprep.subr.mxu0 0.0
    %834 = vmatpush1.msra.mxu0 0.0
    %835 = vmatprep.subr.mxu0 0.0
    %836 = vmatpush1.msra.mxu0 0.0
    %837 = vmatprep.subr.mxu0 0.0
    %838 = vmatpush1.msra.mxu0 0.0
    %839 = vmatprep.subr.mxu0 0.0
    %840 = vmatpush1.msra.mxu0 0.0
    %841 = vmatprep.subr.mxu0 0.0
    %842 = vmatpush1.msra.mxu0 0.0
    %843 = vmatprep.subr.mxu0 0.0
    %844 = vmatpush1.msra.mxu0 0.0
    %845 = vmatprep.subr.mxu0 0.0
    %846 = vmatpush1.msra.mxu0 0.0
    %847 = vmatprep.subr.mxu0 0.0
    %848 = vmatpush1.msra.mxu0 0.0
    %849 = vmatprep.subr.mxu0 0.0
    %850 = vmatpush1.msra.mxu0 %v814
    %851 = vmatprep.subr.mxu0 0.0
    %852 = vmatpush2.msra.mxu0 0.0
    %853 = vmatprep.subr.mxu0 0.0
    %854 = vmatpush2.msra.mxu0 0.0
    %855 = vmatprep.subr.mxu0 0.0
    %856 = vmatpush2.msra.mxu0 0.0
    %857 = vmatprep.subr.mxu0 0.0
    %858 = vmatpush2.msra.mxu0 0.0
    %859 = vmatprep.subr.mxu0 0.0
    %860 = vmatpush2.msra.mxu0 0.0
    %861 = vmatprep.subr.mxu0 0.0
    %862 = vmatpush2.msra.mxu0 0.0
    %863 = vmatprep.subr.mxu0 0.0
    %864 = vmatpush2.msra.mxu0 0.0
    %865 = vmatprep.subr.mxu0 0.0
    %866 = vmatpush2.msra.mxu0 0.0
    %867 = vmatprep.subr.mxu0 0.0
    %868 = vmatpush2.msra.mxu0 0.0
    %869 = vmatprep.subr.mxu0 0.0
    %870 = vmatpush2.msra.mxu0 0.0
    %871 = vmatprep.subr.mxu0 0.0
    %872 = vmatpush2.msra.mxu0 0.0
    %873 = vmatprep.subr.mxu0 0.0
    %874 = vmatpush2.msra.mxu0 0.0
    %875 = vmatprep.subr.mxu0 0.0
    %876 = vmatpush2.msra.mxu0 0.0
    %877 = vmatprep.subr.mxu0 0.0
    %878 = vmatpush2.msra.mxu0 0.0
    %879 = vmatprep.subr.mxu0 0.0
    %880 = vmatpush2.msra.mxu0 0.0
    %881 = vmatprep.subr.mxu0 0.0
    %882 = vmatpush2.msra.mxu0 0.0
    %883 = vmatprep.mubr.f32.mxu0 0.0
    %884 = vmatmul.mubr.f32.gmra.mxu0 %v817
    %v885 = vpop.f32.mrf.mxu0
    %v886 = vadd.f32 0.0, %v885
    %v887 = vpop.f32.mrf.mxu0
    %888 = vdwg.mxu0
    %889 = vrot.lane.b32.xlu0 %v211, 104
    %v890 = vpop.permute.xlu0 %889
    %891 = vrot.lane.b32.xlu0 %v296, 104
    %v892 = vpop.permute.xlu0 %891
    %v893 = vsel %vm394, %v890, 0
    %v895 = vsel %vm394, %v892, 0
    %897 = vmatprep.subr.mxu0 0.0
    %898 = vmatpush1.xpose.msra.mxu0 0.0
    %899 = vmatprep.subr.mxu0 0.0
    %900 = vmatpush1.xpose.msra.mxu0 0.0
    %901 = vmatprep.subr.mxu0 0.0
    %902 = vmatpush1.xpose.msra.mxu0 0.0
    %903 = vmatprep.subr.mxu0 0.0
    %904 = vmatpush1.xpose.msra.mxu0 0.0
    %905 = vmatprep.subr.mxu0 0.0
    %906 = vmatpush1.xpose.msra.mxu0 0.0
    %907 = vmatprep.subr.mxu0 0.0
    %908 = vmatpush1.xpose.msra.mxu0 0.0
    %909 = vmatprep.subr.mxu0 0.0
    %910 = vmatpush1.xpose.msra.mxu0 0.0
    %911 = vmatprep.subr.mxu0 0.0
    %912 = vmatpush1.xpose.msra.mxu0 0.0
    %913 = vmatprep.subr.mxu0 0.0
    %914 = vmatpush1.xpose.msra.mxu0 0.0
    %915 = vmatprep.subr.mxu0 0.0
    %916 = vmatpush1.xpose.msra.mxu0 0.0
    %917 = vmatprep.subr.mxu0 0.0
    %918 = vmatpush1.xpose.msra.mxu0 0.0
    %919 = vmatprep.subr.mxu0 0.0
    %920 = vmatpush1.xpose.msra.mxu0 0.0
    %921 = vmatprep.subr.mxu0 0.0
    %922 = vmatpush1.xpose.msra.mxu0 0.0
    %923 = vmatprep.subr.mxu0 0.0
    %924 = vmatpush1.xpose.msra.mxu0 0.0
    %925 = vmatprep.subr.mxu0 0.0
    %926 = vmatpush1.xpose.msra.mxu0 0.0
    %927 = vmatprep.subr.mxu0 0.0
    %928 = vmatpush1.xpose.msra.mxu0 %v895
    %929 = vmatprep.subr.mxu0 0.0
    %930 = vmatpush2.xpose.msra.mxu0 0.0
    %931 = vmatprep.subr.mxu0 0.0
    %932 = vmatpush2.xpose.msra.mxu0 0.0
    %933 = vmatprep.subr.mxu0 0.0
    %934 = vmatpush2.xpose.msra.mxu0 0.0
    %935 = vmatprep.subr.mxu0 0.0
    %936 = vmatpush2.xpose.msra.mxu0 0.0
    %937 = vmatprep.subr.mxu0 0.0
    %938 = vmatpush2.xpose.msra.mxu0 0.0
    %939 = vmatprep.subr.mxu0 0.0
    %940 = vmatpush2.xpose.msra.mxu0 0.0
    %941 = vmatprep.subr.mxu0 0.0
    %942 = vmatpush2.xpose.msra.mxu0 0.0
    %943 = vmatprep.subr.mxu0 0.0
    %944 = vmatpush2.xpose.msra.mxu0 0.0
    %945 = vmatprep.subr.mxu0 0.0
    %946 = vmatpush2.xpose.msra.mxu0 0.0
    %947 = vmatprep.subr.mxu0 0.0
    %948 = vmatpush2.xpose.msra.mxu0 0.0
    %949 = vmatprep.subr.mxu0 0.0
    %950 = vmatpush2.xpose.msra.mxu0 0.0
    %951 = vmatprep.subr.mxu0 0.0
    %952 = vmatpush2.xpose.msra.mxu0 0.0
    %953 = vmatprep.subr.mxu0 0.0
    %954 = vmatpush2.xpose.msra.mxu0 0.0
    %955 = vmatprep.subr.mxu0 0.0
    %956 = vmatpush2.xpose.msra.mxu0 0.0
    %957 = vmatprep.subr.mxu0 0.0
    %958 = vmatpush2.xpose.msra.mxu0 0.0
    %959 = vmatprep.subr.mxu0 0.0
    %960 = vmatpush2.xpose.msra.mxu0 0.0
    %961 = vmatprep.mubr.f32.mxu0 0.0
    %962 = vmatmul.mubr.f32.gmra.mxu0 %v893
    %v963 = vpop.f32.mrf.mxu0
    %v964 = vadd.f32 0.0, %v963
    %v965 = vpop.f32.mrf.mxu0
    %966 = vdwg.mxu0
    %v967 = vsel %vm393, %v964, -1000000.0
    %v968 = vsel %vm394, %v967, -inf
    %969 = vmax.xlane.f32.xlu0 %v968
    %v970 = vpop.xlane.xlu0 %969
    %v971 = vsub.f32 %v967, %v970
    %v972 = vmul.f32 %v971, 1.442695
    %v973 = vpow.pop %v972
    %v974 = vsel %vm394, %v973, 0.0
    %975 = vadd.xlane.f32.xlu0 %v974
    %v976 = vpop.xlane.xlu0 %975
    %v977 = vrcp.pop %v976
    %v978 = vmul.f32 %v973, %v977
    %979 = vrot.lane.b32.xlu0 %v381, 104
    %v980 = vpop.permute.xlu0 %979
    %v983 = vsel %vm394, %v978, 0
    %985 = vmatprep.subr.mxu0 0.0
    %986 = vmatpush1.msra.mxu0 0.0
    %987 = vmatprep.subr.mxu0 0.0
    %988 = vmatpush1.msra.mxu0 0.0
    %989 = vmatprep.subr.mxu0 0.0
    %990 = vmatpush1.msra.mxu0 0.0
    %991 = vmatprep.subr.mxu0 0.0
    %992 = vmatpush1.msra.mxu0 0.0
    %993 = vmatprep.subr.mxu0 0.0
    %994 = vmatpush1.msra.mxu0 0.0
    %995 = vmatprep.subr.mxu0 0.0
    %996 = vmatpush1.msra.mxu0 0.0
    %997 = vmatprep.subr.mxu0 0.0
    %998 = vmatpush1.msra.mxu0 0.0
    %999 = vmatprep.subr.mxu0 0.0
    %1000 = vmatpush1.msra.mxu0 0.0
    %1001 = vmatprep.subr.mxu0 0.0
    %1002 = vmatpush1.msra.mxu0 0.0
    %1003 = vmatprep.subr.mxu0 0.0
    %1004 = vmatpush1.msra.mxu0 0.0
    %1005 = vmatprep.subr.mxu0 0.0
    %1006 = vmatpush1.msra.mxu0 0.0
    %1007 = vmatprep.subr.mxu0 0.0
    %1008 = vmatpush1.msra.mxu0 0.0
    %1009 = vmatprep.subr.mxu0 0.0
    %1010 = vmatpush1.msra.mxu0 0.0
    %1011 = vmatprep.subr.mxu0 0.0
    %1012 = vmatpush1.msra.mxu0 0.0
    %1013 = vmatprep.subr.mxu0 0.0
    %1014 = vmatpush1.msra.mxu0 0.0
    %1015 = vmatprep.subr.mxu0 0.0
    %1016 = vmatpush1.msra.mxu0 %v980
    %1017 = vmatprep.subr.mxu0 0.0
    %1018 = vmatpush2.msra.mxu0 0.0
    %1019 = vmatprep.subr.mxu0 0.0
    %1020 = vmatpush2.msra.mxu0 0.0
    %1021 = vmatprep.subr.mxu0 0.0
    %1022 = vmatpush2.msra.mxu0 0.0
    %1023 = vmatprep.subr.mxu0 0.0
    %1024 = vmatpush2.msra.mxu0 0.0
    %1025 = vmatprep.subr.mxu0 0.0
    %1026 = vmatpush2.msra.mxu0 0.0
    %1027 = vmatprep.subr.mxu0 0.0
    %1028 = vmatpush2.msra.mxu0 0.0
    %1029 = vmatprep.subr.mxu0 0.0
    %1030 = vmatpush2.msra.mxu0 0.0
    %1031 = vmatprep.subr.mxu0 0.0
    %1032 = vmatpush2.msra.mxu0 0.0
    %1033 = vmatprep.subr.mxu0 0.0
    %1034 = vmatpush2.msra.mxu0 0.0
    %1035 = vmatprep.subr.mxu0 0.0
    %1036 = vmatpush2.msra.mxu0 0.0
    %1037 = vmatprep.subr.mxu0 0.0
    %1038 = vmatpush2.msra.mxu0 0.0
    %1039 = vmatprep.subr.mxu0 0.0
    %1040 = vmatpush2.msra.mxu0 0.0
    %1041 = vmatprep.subr.mxu0 0.0
    %1042 = vmatpush2.msra.mxu0 0.0
    %1043 = vmatprep.subr.mxu0 0.0
    %1044 = vmatpush2.msra.mxu0 0.0
    %1045 = vmatprep.subr.mxu0 0.0
    %1046 = vmatpush2.msra.mxu0 0.0
    %1047 = vmatprep.subr.mxu0 0.0
    %1048 = vmatpush2.msra.mxu0 0.0
    %1049 = vmatprep.mubr.f32.mxu0 0.0
    %1050 = vmatmul.mubr.f32.gmra.mxu0 %v983
    %v1051 = vpop.f32.mrf.mxu0
    %v1052 = vadd.f32 0.0, %v1051
    %v1053 = vpop.f32.mrf.mxu0
    %1054 = vdwg.mxu0
    %1056 = vrot.lane.b32.xlu0 %v720, 8
    %v1057 = vpop.permute.xlu0 %1056
    %1060 = vrot.lane.b32.xlu0 %v886, 16
    %v1061 = vpop.permute.xlu0 %1060
    %1064 = vrot.lane.b32.xlu0 %v1052, 24
    %v1065 = vpop.permute.xlu0 %1064
    %v1067 = vsel %vm394, %v553, %v1057
    %vm1068 = vcmask 130048
    %v1069 = vsel %vm1068, %v1067, %v1061
    %vm1070 = vcmask 195584
    %v1071 = vsel %vm1070, %v1069, %v1065
    %s1072 = sld [smem:[#allocation3 + $0x1]]
    %v1073 = vstv %s1072
    %vm1074 = vcmp.lt.s32.totalorder %v390, %v1073
    %v1076 = vsel %vm394, %v216, 0
    %v1079 = vsel %vm394, %v301, 0
    %1081 = vmatprep.subr.mxu0 0.0
    %1082 = vmatpush1.xpose.msra.mxu0 0.0
    %1083 = vmatprep.subr.mxu0 0.0
    %1084 = vmatpush1.xpose.msra.mxu0 0.0
    %1085 = vmatprep.subr.mxu0 0.0
    %1086 = vmatpush1.xpose.msra.mxu0 0.0
    %1087 = vmatprep.subr.mxu0 0.0
    %1088 = vmatpush1.xpose.msra.mxu0 0.0
    %1089 = vmatprep.subr.mxu0 0.0
    %1090 = vmatpush1.xpose.msra.mxu0 0.0
    %1091 = vmatprep.subr.mxu0 0.0
    %1092 = vmatpush1.xpose.msra.mxu0 0.0
    %1093 = vmatprep.subr.mxu0 0.0
    %1094 = vmatpush1.xpose.msra.mxu0 0.0
    %1095 = vmatprep.subr.mxu0 0.0
    %1096 = vmatpush1.xpose.msra.mxu0 0.0
    %1097 = vmatprep.subr.mxu0 0.0
    %1098 = vmatpush1.xpose.msra.mxu0 0.0
    %1099 = vmatprep.subr.mxu0 0.0
    %1100 = vmatpush1.xpose.msra.mxu0 0.0
    %1101 = vmatprep.subr.mxu0 0.0
    %1102 = vmatpush1.xpose.msra.mxu0 0.0
    %1103 = vmatprep.subr.mxu0 0.0
    %1104 = vmatpush1.xpose.msra.mxu0 0.0
    %1105 = vmatprep.subr.mxu0 0.0
    %1106 = vmatpush1.xpose.msra.mxu0 0.0
    %1107 = vmatprep.subr.mxu0 0.0
    %1108 = vmatpush1.xpose.msra.mxu0 0.0
    %1109 = vmatprep.subr.mxu0 0.0
    %1110 = vmatpush1.xpose.msra.mxu0 0.0
    %1111 = vmatprep.subr.mxu0 0.0
    %1112 = vmatpush1.xpose.msra.mxu0 %v1079
    %1113 = vmatprep.subr.mxu0 0.0
    %1114 = vmatpush2.xpose.msra.mxu0 0.0
    %1115 = vmatprep.subr.mxu0 0.0
    %1116 = vmatpush2.xpose.msra.mxu0 0.0
    %1117 = vmatprep.subr.mxu0 0.0
    %1118 = vmatpush2.xpose.msra.mxu0 0.0
    %1119 = vmatprep.subr.mxu0 0.0
    %1120 = vmatpush2.xpose.msra.mxu0 0.0
    %1121 = vmatprep.subr.mxu0 0.0
    %1122 = vmatpush2.xpose.msra.mxu0 0.0
    %1123 = vmatprep.subr.mxu0 0.0
    %1124 = vmatpush2.xpose.msra.mxu0 0.0
    %1125 = vmatprep.subr.mxu0 0.0
    %1126 = vmatpush2.xpose.msra.mxu0 0.0
    %1127 = vmatprep.subr.mxu0 0.0
    %1128 = vmatpush2.xpose.msra.mxu0 0.0
    %1129 = vmatprep.subr.mxu0 0.0
    %1130 = vmatpush2.xpose.msra.mxu0 0.0
    %1131 = vmatprep.subr.mxu0 0.0
    %1132 = vmatpush2.xpose.msra.mxu0 0.0
    %1133 = vmatprep.subr.mxu0 0.0
    %1134 = vmatpush2.xpose.msra.mxu0 0.0
    %1135 = vmatprep.subr.mxu0 0.0
    %1136 = vmatpush2.xpose.msra.mxu0 0.0
    %1137 = vmatprep.subr.mxu0 0.0
    %1138 = vmatpush2.xpose.msra.mxu0 0.0
    %1139 = vmatprep.subr.mxu0 0.0
    %1140 = vmatpush2.xpose.msra.mxu0 0.0
    %1141 = vmatprep.subr.mxu0 0.0
    %1142 = vmatpush2.xpose.msra.mxu0 0.0
    %1143 = vmatprep.subr.mxu0 0.0
    %1144 = vmatpush2.xpose.msra.mxu0 0.0
    %1145 = vmatprep.mubr.f32.mxu0 0.0
    %1146 = vmatmul.mubr.f32.gmra.mxu0 %v1076
    %v1147 = vpop.f32.mrf.mxu0
    %v1148 = vadd.f32 0.0, %v1147
    %v1149 = vpop.f32.mrf.mxu0
    %1150 = vdwg.mxu0
    %v1151 = vsel %vm1074, %v1148, -1000000.0
    %v1152 = vsel %vm394, %v1151, -inf
    %1153 = vmax.xlane.f32.xlu0 %v1152
    %v1154 = vpop.xlane.xlu0 %1153
    %v1155 = vsub.f32 %v1151, %v1154
    %v1156 = vmul.f32 %v1155, 1.442695
    %v1157 = vpow.pop %v1156
    %v1158 = vsel %vm394, %v1157, 0.0
    %1159 = vadd.xlane.f32.xlu0 %v1158
    %v1160 = vpop.xlane.xlu0 %1159
    %v1161 = vrcp.pop %v1160
    %v1162 = vmul.f32 %v1157, %v1161
    %v1164 = vsel %vm394, %v1162, 0
    %1166 = vmatprep.subr.mxu0 0.0
    %1167 = vmatpush1.msra.mxu0 0.0
    %1168 = vmatprep.subr.mxu0 0.0
    %1169 = vmatpush1.msra.mxu0 0.0
    %1170 = vmatprep.subr.mxu0 0.0
    %1171 = vmatpush1.msra.mxu0 0.0
    %1172 = vmatprep.subr.mxu0 0.0
    %1173 = vmatpush1.msra.mxu0 0.0
    %1174 = vmatprep.subr.mxu0 0.0
    %1175 = vmatpush1.msra.mxu0 0.0
    %1176 = vmatprep.subr.mxu0 0.0
    %1177 = vmatpush1.msra.mxu0 0.0
    %1178 = vmatprep.subr.mxu0 0.0
    %1179 = vmatpush1.msra.mxu0 0.0
    %1180 = vmatprep.subr.mxu0 0.0
    %1181 = vmatpush1.msra.mxu0 0.0
    %1182 = vmatprep.subr.mxu0 0.0
    %1183 = vmatpush1.msra.mxu0 0.0
    %1184 = vmatprep.subr.mxu0 0.0
    %1185 = vmatpush1.msra.mxu0 0.0
    %1186 = vmatprep.subr.mxu0 0.0
    %1187 = vmatpush1.msra.mxu0 0.0
    %1188 = vmatprep.subr.mxu0 0.0
    %1189 = vmatpush1.msra.mxu0 0.0
    %1190 = vmatprep.subr.mxu0 0.0
    %1191 = vmatpush1.msra.mxu0 0.0
    %1192 = vmatprep.subr.mxu0 0.0
    %1193 = vmatpush1.msra.mxu0 0.0
    %1194 = vmatprep.subr.mxu0 0.0
    %1195 = vmatpush1.msra.mxu0 0.0
    %1196 = vmatprep.subr.mxu0 0.0
    %1197 = vmatpush1.msra.mxu0 %v386
    %1198 = vmatprep.subr.mxu0 0.0
    %1199 = vmatpush2.msra.mxu0 0.0
    %1200 = vmatprep.subr.mxu0 0.0
    %1201 = vmatpush2.msra.mxu0 0.0
    %1202 = vmatprep.subr.mxu0 0.0
    %1203 = vmatpush2.msra.mxu0 0.0
    %1204 = vmatprep.subr.mxu0 0.0
    %1205 = vmatpush2.msra.mxu0 0.0
    %1206 = vmatprep.subr.mxu0 0.0
    %1207 = vmatpush2.msra.mxu0 0.0
    %1208 = vmatprep.subr.mxu0 0.0
    %1209 = vmatpush2.msra.mxu0 0.0
    %1210 = vmatprep.subr.mxu0 0.0
    %1211 = vmatpush2.msra.mxu0 0.0
    %1212 = vmatprep.subr.mxu0 0.0
    %1213 = vmatpush2.msra.mxu0 0.0
    %1214 = vmatprep.subr.mxu0 0.0
    %1215 = vmatpush2.msra.mxu0 0.0
    %1216 = vmatprep.subr.mxu0 0.0
    %1217 = vmatpush2.msra.mxu0 0.0
    %1218 = vmatprep.subr.mxu0 0.0
    %1219 = vmatpush2.msra.mxu0 0.0
    %1220 = vmatprep.subr.mxu0 0.0
    %1221 = vmatpush2.msra.mxu0 0.0
    %1222 = vmatprep.subr.mxu0 0.0
    %1223 = vmatpush2.msra.mxu0 0.0
    %1224 = vmatprep.subr.mxu0 0.0
    %1225 = vmatpush2.msra.mxu0 0.0
    %1226 = vmatprep.subr.mxu0 0.0
    %1227 = vmatpush2.msra.mxu0 0.0
    %1228 = vmatprep.subr.mxu0 0.0
    %1229 = vmatpush2.msra.mxu0 0.0
    %1230 = vmatprep.mubr.f32.mxu0 0.0
    %1231 = vmatmul.mubr.f32.gmra.mxu0 %v1164
    %v1232 = vpop.f32.mrf.mxu0
    %v1233 = vadd.f32 0.0, %v1232
    %v1234 = vpop.f32.mrf.mxu0
    %1235 = vdwg.mxu0
    %1236 = vrot.lane.b32.xlu0 %v216, 120
    %v1237 = vpop.permute.xlu0 %1236
    %1238 = vrot.lane.b32.xlu0 %v301, 120
    %v1239 = vpop.permute.xlu0 %1238
    %v1240 = vsel %vm394, %v1237, 0
    %v1242 = vsel %vm394, %v1239, 0
    %1244 = vmatprep.subr.mxu0 0.0
    %1245 = vmatpush1.xpose.msra.mxu0 0.0
    %1246 = vmatprep.subr.mxu0 0.0
    %1247 = vmatpush1.xpose.msra.mxu0 0.0
    %1248 = vmatprep.subr.mxu0 0.0
    %1249 = vmatpush1.xpose.msra.mxu0 0.0
    %1250 = vmatprep.subr.mxu0 0.0
    %1251 = vmatpush1.xpose.msra.mxu0 0.0
    %1252 = vmatprep.subr.mxu0 0.0
    %1253 = vmatpush1.xpose.msra.mxu0 0.0
    %1254 = vmatprep.subr.mxu0 0.0
    %1255 = vmatpush1.xpose.msra.mxu0 0.0
    %1256 = vmatprep.subr.mxu0 0.0
    %1257 = vmatpush1.xpose.msra.mxu0 0.0
    %1258 = vmatprep.subr.mxu0 0.0
    %1259 = vmatpush1.xpose.msra.mxu0 0.0
    %1260 = vmatprep.subr.mxu0 0.0
    %1261 = vmatpush1.xpose.msra.mxu0 0.0
    %1262 = vmatprep.subr.mxu0 0.0
    %1263 = vmatpush1.xpose.msra.mxu0 0.0
    %1264 = vmatprep.subr.mxu0 0.0
    %1265 = vmatpush1.xpose.msra.mxu0 0.0
    %1266 = vmatprep.subr.mxu0 0.0
    %1267 = vmatpush1.xpose.msra.mxu0 0.0
    %1268 = vmatprep.subr.mxu0 0.0
    %1269 = vmatpush1.xpose.msra.mxu0 0.0
    %1270 = vmatprep.subr.mxu0 0.0
    %1271 = vmatpush1.xpose.msra.mxu0 0.0
    %1272 = vmatprep.subr.mxu0 0.0
    %1273 = vmatpush1.xpose.msra.mxu0 0.0
    %1274 = vmatprep.subr.mxu0 0.0
    %1275 = vmatpush1.xpose.msra.mxu0 %v1242
    %1276 = vmatprep.subr.mxu0 0.0
    %1277 = vmatpush2.xpose.msra.mxu0 0.0
    %1278 = vmatprep.subr.mxu0 0.0
    %1279 = vmatpush2.xpose.msra.mxu0 0.0
    %1280 = vmatprep.subr.mxu0 0.0
    %1281 = vmatpush2.xpose.msra.mxu0 0.0
    %1282 = vmatprep.subr.mxu0 0.0
    %1283 = vmatpush2.xpose.msra.mxu0 0.0
    %1284 = vmatprep.subr.mxu0 0.0
    %1285 = vmatpush2.xpose.msra.mxu0 0.0
    %1286 = vmatprep.subr.mxu0 0.0
    %1287 = vmatpush2.xpose.msra.mxu0 0.0
    %1288 = vmatprep.subr.mxu0 0.0
    %1289 = vmatpush2.xpose.msra.mxu0 0.0
    %1290 = vmatprep.subr.mxu0 0.0
    %1291 = vmatpush2.xpose.msra.mxu0 0.0
    %1292 = vmatprep.subr.mxu0 0.0
    %1293 = vmatpush2.xpose.msra.mxu0 0.0
    %1294 = vmatprep.subr.mxu0 0.0
    %1295 = vmatpush2.xpose.msra.mxu0 0.0
    %1296 = vmatprep.subr.mxu0 0.0
    %1297 = vmatpush2.xpose.msra.mxu0 0.0
    %1298 = vmatprep.subr.mxu0 0.0
    %1299 = vmatpush2.xpose.msra.mxu0 0.0
    %1300 = vmatprep.subr.mxu0 0.0
    %1301 = vmatpush2.xpose.msra.mxu0 0.0
    %1302 = vmatprep.subr.mxu0 0.0
    %1303 = vmatpush2.xpose.msra.mxu0 0.0
    %1304 = vmatprep.subr.mxu0 0.0
    %1305 = vmatpush2.xpose.msra.mxu0 0.0
    %1306 = vmatprep.subr.mxu0 0.0
    %1307 = vmatpush2.xpose.msra.mxu0 0.0
    %1308 = vmatprep.mubr.f32.mxu0 0.0
    %1309 = vmatmul.mubr.f32.gmra.mxu0 %v1240
    %v1310 = vpop.f32.mrf.mxu0
    %v1311 = vadd.f32 0.0, %v1310
    %v1312 = vpop.f32.mrf.mxu0
    %1313 = vdwg.mxu0
    %v1314 = vsel %vm1074, %v1311, -1000000.0
    %v1315 = vsel %vm394, %v1314, -inf
    %1316 = vmax.xlane.f32.xlu0 %v1315
    %v1317 = vpop.xlane.xlu0 %1316
    %v1318 = vsub.f32 %v1314, %v1317
    %v1319 = vmul.f32 %v1318, 1.442695
    %v1320 = vpow.pop %v1319
    %v1321 = vsel %vm394, %v1320, 0.0
    %1322 = vadd.xlane.f32.xlu0 %v1321
    %v1323 = vpop.xlane.xlu0 %1322
    %v1324 = vrcp.pop %v1323
    %v1325 = vmul.f32 %v1320, %v1324
    %1327 = vrot.lane.b32.xlu0 %v386, 120
    %v1328 = vpop.permute.xlu0 %1327
    %v1331 = vsel %vm394, %v1325, 0
    %1333 = vmatprep.subr.mxu0 0.0
    %1334 = vmatpush1.msra.mxu0 0.0
    %1335 = vmatprep.subr.mxu0 0.0
    %1336 = vmatpush1.msra.mxu0 0.0
    %1337 = vmatprep.subr.mxu0 0.0
    %1338 = vmatpush1.msra.mxu0 0.0
    %1339 = vmatprep.subr.mxu0 0.0
    %1340 = vmatpush1.msra.mxu0 0.0
    %1341 = vmatprep.subr.mxu0 0.0
    %1342 = vmatpush1.msra.mxu0 0.0
    %1343 = vmatprep.subr.mxu0 0.0
    %1344 = vmatpush1.msra.mxu0 0.0
    %1345 = vmatprep.subr.mxu0 0.0
    %1346 = vmatpush1.msra.mxu0 0.0
    %1347 = vmatprep.subr.mxu0 0.0
    %1348 = vmatpush1.msra.mxu0 0.0
    %1349 = vmatprep.subr.mxu0 0.0
    %1350 = vmatpush1.msra.mxu0 0.0
    %1351 = vmatprep.subr.mxu0 0.0
    %1352 = vmatpush1.msra.mxu0 0.0
    %1353 = vmatprep.subr.mxu0 0.0
    %1354 = vmatpush1.msra.mxu0 0.0
    %1355 = vmatprep.subr.mxu0 0.0
    %1356 = vmatpush1.msra.mxu0 0.0
    %1357 = vmatprep.subr.mxu0 0.0
    %1358 = vmatpush1.msra.mxu0 0.0
    %1359 = vmatprep.subr.mxu0 0.0
    %1360 = vmatpush1.msra.mxu0 0.0
    %1361 = vmatprep.subr.mxu0 0.0
    %1362 = vmatpush1.msra.mxu0 0.0
    %1363 = vmatprep.subr.mxu0 0.0
    %1364 = vmatpush1.msra.mxu0 %v1328
    %1365 = vmatprep.subr.mxu0 0.0
    %1366 = vmatpush2.msra.mxu0 0.0
    %1367 = vmatprep.subr.mxu0 0.0
    %1368 = vmatpush2.msra.mxu0 0.0
    %1369 = vmatprep.subr.mxu0 0.0
    %1370 = vmatpush2.msra.mxu0 0.0
    %1371 = vmatprep.subr.mxu0 0.0
    %1372 = vmatpush2.msra.mxu0 0.0
    %1373 = vmatprep.subr.mxu0 0.0
    %1374 = vmatpush2.msra.mxu0 0.0
    %1375 = vmatprep.subr.mxu0 0.0
    %1376 = vmatpush2.msra.mxu0 0.0
    %1377 = vmatprep.subr.mxu0 0.0
    %1378 = vmatpush2.msra.mxu0 0.0
    %1379 = vmatprep.subr.mxu0 0.0
    %1380 = vmatpush2.msra.mxu0 0.0
    %1381 = vmatprep.subr.mxu0 0.0
    %1382 = vmatpush2.msra.mxu0 0.0
    %1383 = vmatprep.subr.mxu0 0.0
    %1384 = vmatpush2.msra.mxu0 0.0
    %1385 = vmatprep.subr.mxu0 0.0
    %1386 = vmatpush2.msra.mxu0 0.0
    %1387 = vmatprep.subr.mxu0 0.0
    %1388 = vmatpush2.msra.mxu0 0.0
    %1389 = vmatprep.subr.mxu0 0.0
    %1390 = vmatpush2.msra.mxu0 0.0
    %1391 = vmatprep.subr.mxu0 0.0
    %1392 = vmatpush2.msra.mxu0 0.0
    %1393 = vmatprep.subr.mxu0 0.0
    %1394 = vmatpush2.msra.mxu0 0.0
    %1395 = vmatprep.subr.mxu0 0.0
    %1396 = vmatpush2.msra.mxu0 0.0
    %1397 = vmatprep.mubr.f32.mxu0 0.0
    %1398 = vmatmul.mubr.f32.gmra.mxu0 %v1331
    %v1399 = vpop.f32.mrf.mxu0
    %v1400 = vadd.f32 0.0, %v1399
    %v1401 = vpop.f32.mrf.mxu0
    %1402 = vdwg.mxu0
    %1403 = vrot.lane.b32.xlu0 %v216, 112
    %v1404 = vpop.permute.xlu0 %1403
    %1405 = vrot.lane.b32.xlu0 %v301, 112
    %v1406 = vpop.permute.xlu0 %1405
    %v1407 = vsel %vm394, %v1404, 0
    %v1409 = vsel %vm394, %v1406, 0
    %1411 = vmatprep.subr.mxu0 0.0
    %1412 = vmatpush1.xpose.msra.mxu0 0.0
    %1413 = vmatprep.subr.mxu0 0.0
    %1414 = vmatpush1.xpose.msra.mxu0 0.0
    %1415 = vmatprep.subr.mxu0 0.0
    %1416 = vmatpush1.xpose.msra.mxu0 0.0
    %1417 = vmatprep.subr.mxu0 0.0
    %1418 = vmatpush1.xpose.msra.mxu0 0.0
    %1419 = vmatprep.subr.mxu0 0.0
    %1420 = vmatpush1.xpose.msra.mxu0 0.0
    %1421 = vmatprep.subr.mxu0 0.0
    %1422 = vmatpush1.xpose.msra.mxu0 0.0
    %1423 = vmatprep.subr.mxu0 0.0
    %1424 = vmatpush1.xpose.msra.mxu0 0.0
    %1425 = vmatprep.subr.mxu0 0.0
    %1426 = vmatpush1.xpose.msra.mxu0 0.0
    %1427 = vmatprep.subr.mxu0 0.0
    %1428 = vmatpush1.xpose.msra.mxu0 0.0
    %1429 = vmatprep.subr.mxu0 0.0
    %1430 = vmatpush1.xpose.msra.mxu0 0.0
    %1431 = vmatprep.subr.mxu0 0.0
    %1432 = vmatpush1.xpose.msra.mxu0 0.0
    %1433 = vmatprep.subr.mxu0 0.0
    %1434 = vmatpush1.xpose.msra.mxu0 0.0
    %1435 = vmatprep.subr.mxu0 0.0
    %1436 = vmatpush1.xpose.msra.mxu0 0.0
    %1437 = vmatprep.subr.mxu0 0.0
    %1438 = vmatpush1.xpose.msra.mxu0 0.0
    %1439 = vmatprep.subr.mxu0 0.0
    %1440 = vmatpush1.xpose.msra.mxu0 0.0
    %1441 = vmatprep.subr.mxu0 0.0
    %1442 = vmatpush1.xpose.msra.mxu0 %v1409
    %1443 = vmatprep.subr.mxu0 0.0
    %1444 = vmatpush2.xpose.msra.mxu0 0.0
    %1445 = vmatprep.subr.mxu0 0.0
    %1446 = vmatpush2.xpose.msra.mxu0 0.0
    %1447 = vmatprep.subr.mxu0 0.0
    %1448 = vmatpush2.xpose.msra.mxu0 0.0
    %1449 = vmatprep.subr.mxu0 0.0
    %1450 = vmatpush2.xpose.msra.mxu0 0.0
    %1451 = vmatprep.subr.mxu0 0.0
    %1452 = vmatpush2.xpose.msra.mxu0 0.0
    %1453 = vmatprep.subr.mxu0 0.0
    %1454 = vmatpush2.xpose.msra.mxu0 0.0
    %1455 = vmatprep.subr.mxu0 0.0
    %1456 = vmatpush2.xpose.msra.mxu0 0.0
    %1457 = vmatprep.subr.mxu0 0.0
    %1458 = vmatpush2.xpose.msra.mxu0 0.0
    %1459 = vmatprep.subr.mxu0 0.0
    %1460 = vmatpush2.xpose.msra.mxu0 0.0
    %1461 = vmatprep.subr.mxu0 0.0
    %1462 = vmatpush2.xpose.msra.mxu0 0.0
    %1463 = vmatprep.subr.mxu0 0.0
    %1464 = vmatpush2.xpose.msra.mxu0 0.0
    %1465 = vmatprep.subr.mxu0 0.0
    %1466 = vmatpush2.xpose.msra.mxu0 0.0
    %1467 = vmatprep.subr.mxu0 0.0
    %1468 = vmatpush2.xpose.msra.mxu0 0.0
    %1469 = vmatprep.subr.mxu0 0.0
    %1470 = vmatpush2.xpose.msra.mxu0 0.0
    %1471 = vmatprep.subr.mxu0 0.0
    %1472 = vmatpush2.xpose.msra.mxu0 0.0
    %1473 = vmatprep.subr.mxu0 0.0
    %1474 = vmatpush2.xpose.msra.mxu0 0.0
    %1475 = vmatprep.mubr.f32.mxu0 0.0
    %1476 = vmatmul.mubr.f32.gmra.mxu0 %v1407
    %v1477 = vpop.f32.mrf.mxu0
    %v1478 = vadd.f32 0.0, %v1477
    %v1479 = vpop.f32.mrf.mxu0
    %1480 = vdwg.mxu0
    %v1481 = vsel %vm1074, %v1478, -1000000.0
    %v1482 = vsel %vm394, %v1481, -inf
    %1483 = vmax.xlane.f32.xlu0 %v1482
    %v1484 = vpop.xlane.xlu0 %1483
    %v1485 = vsub.f32 %v1481, %v1484
    %v1486 = vmul.f32 %v1485, 1.442695
    %v1487 = vpow.pop %v1486
    %v1488 = vsel %vm394, %v1487, 0.0
    %1489 = vadd.xlane.f32.xlu0 %v1488
    %v1490 = vpop.xlane.xlu0 %1489
    %v1491 = vrcp.pop %v1490
    %v1492 = vmul.f32 %v1487, %v1491
    %1493 = vrot.lane.b32.xlu0 %v386, 112
    %v1494 = vpop.permute.xlu0 %1493
    %v1497 = vsel %vm394, %v1492, 0
    %1499 = vmatprep.subr.mxu0 0.0
    %1500 = vmatpush1.msra.mxu0 0.0
    %1501 = vmatprep.subr.mxu0 0.0
    %1502 = vmatpush1.msra.mxu0 0.0
    %1503 = vmatprep.subr.mxu0 0.0
    %1504 = vmatpush1.msra.mxu0 0.0
    %1505 = vmatprep.subr.mxu0 0.0
    %1506 = vmatpush1.msra.mxu0 0.0
    %1507 = vmatprep.subr.mxu0 0.0
    %1508 = vmatpush1.msra.mxu0 0.0
    %1509 = vmatprep.subr.mxu0 0.0
    %1510 = vmatpush1.msra.mxu0 0.0
    %1511 = vmatprep.subr.mxu0 0.0
    %1512 = vmatpush1.msra.mxu0 0.0
    %1513 = vmatprep.subr.mxu0 0.0
    %1514 = vmatpush1.msra.mxu0 0.0
    %1515 = vmatprep.subr.mxu0 0.0
    %1516 = vmatpush1.msra.mxu0 0.0
    %1517 = vmatprep.subr.mxu0 0.0
    %1518 = vmatpush1.msra.mxu0 0.0
    %1519 = vmatprep.subr.mxu0 0.0
    %1520 = vmatpush1.msra.mxu0 0.0
    %1521 = vmatprep.subr.mxu0 0.0
    %1522 = vmatpush1.msra.mxu0 0.0
    %1523 = vmatprep.subr.mxu0 0.0
    %1524 = vmatpush1.msra.mxu0 0.0
    %1525 = vmatprep.subr.mxu0 0.0
    %1526 = vmatpush1.msra.mxu0 0.0
    %1527 = vmatprep.subr.mxu0 0.0
    %1528 = vmatpush1.msra.mxu0 0.0
    %1529 = vmatprep.subr.mxu0 0.0
    %1530 = vmatpush1.msra.mxu0 %v1494
    %1531 = vmatprep.subr.mxu0 0.0
    %1532 = vmatpush2.msra.mxu0 0.0
    %1533 = vmatprep.subr.mxu0 0.0
    %1534 = vmatpush2.msra.mxu0 0.0
    %1535 = vmatprep.subr.mxu0 0.0
    %1536 = vmatpush2.msra.mxu0 0.0
    %1537 = vmatprep.subr.mxu0 0.0
    %1538 = vmatpush2.msra.mxu0 0.0
    %1539 = vmatprep.subr.mxu0 0.0
    %1540 = vmatpush2.msra.mxu0 0.0
    %1541 = vmatprep.subr.mxu0 0.0
    %1542 = vmatpush2.msra.mxu0 0.0
    %1543 = vmatprep.subr.mxu0 0.0
    %1544 = vmatpush2.msra.mxu0 0.0
    %1545 = vmatprep.subr.mxu0 0.0
    %1546 = vmatpush2.msra.mxu0 0.0
    %1547 = vmatprep.subr.mxu0 0.0
    %1548 = vmatpush2.msra.mxu0 0.0
    %1549 = vmatprep.subr.mxu0 0.0
    %1550 = vmatpush2.msra.mxu0 0.0
    %1551 = vmatprep.subr.mxu0 0.0
    %1552 = vmatpush2.msra.mxu0 0.0
    %1553 = vmatprep.subr.mxu0 0.0
    %1554 = vmatpush2.msra.mxu0 0.0
    %1555 = vmatprep.subr.mxu0 0.0
    %1556 = vmatpush2.msra.mxu0 0.0
    %1557 = vmatprep.subr.mxu0 0.0
    %1558 = vmatpush2.msra.mxu0 0.0
    %1559 = vmatprep.subr.mxu0 0.0
    %1560 = vmatpush2.msra.mxu0 0.0
    %1561 = vmatprep.subr.mxu0 0.0
    %1562 = vmatpush2.msra.mxu0 0.0
    %1563 = vmatprep.mubr.f32.mxu0 0.0
    %1564 = vmatmul.mubr.f32.gmra.mxu0 %v1497
    %v1565 = vpop.f32.mrf.mxu0
    %v1566 = vadd.f32 0.0, %v1565
    %v1567 = vpop.f32.mrf.mxu0
    %1568 = vdwg.mxu0
    %1569 = vrot.lane.b32.xlu0 %v216, 104
    %v1570 = vpop.permute.xlu0 %1569
    %1571 = vrot.lane.b32.xlu0 %v301, 104
    %v1572 = vpop.permute.xlu0 %1571
    %v1573 = vsel %vm394, %v1570, 0
    %v1575 = vsel %vm394, %v1572, 0
    %1577 = vmatprep.subr.mxu0 0.0
    %1578 = vmatpush1.xpose.msra.mxu0 0.0
    %1579 = vmatprep.subr.mxu0 0.0
    %1580 = vmatpush1.xpose.msra.mxu0 0.0
    %1581 = vmatprep.subr.mxu0 0.0
    %1582 = vmatpush1.xpose.msra.mxu0 0.0
    %1583 = vmatprep.subr.mxu0 0.0
    %1584 = vmatpush1.xpose.msra.mxu0 0.0
    %1585 = vmatprep.subr.mxu0 0.0
    %1586 = vmatpush1.xpose.msra.mxu0 0.0
    %1587 = vmatprep.subr.mxu0 0.0
    %1588 = vmatpush1.xpose.msra.mxu0 0.0
    %1589 = vmatprep.subr.mxu0 0.0
    %1590 = vmatpush1.xpose.msra.mxu0 0.0
    %1591 = vmatprep.subr.mxu0 0.0
    %1592 = vmatpush1.xpose.msra.mxu0 0.0
    %1593 = vmatprep.subr.mxu0 0.0
    %1594 = vmatpush1.xpose.msra.mxu0 0.0
    %1595 = vmatprep.subr.mxu0 0.0
    %1596 = vmatpush1.xpose.msra.mxu0 0.0
    %1597 = vmatprep.subr.mxu0 0.0
    %1598 = vmatpush1.xpose.msra.mxu0 0.0
    %1599 = vmatprep.subr.mxu0 0.0
    %1600 = vmatpush1.xpose.msra.mxu0 0.0
    %1601 = vmatprep.subr.mxu0 0.0
    %1602 = vmatpush1.xpose.msra.mxu0 0.0
    %1603 = vmatprep.subr.mxu0 0.0
    %1604 = vmatpush1.xpose.msra.mxu0 0.0
    %1605 = vmatprep.subr.mxu0 0.0
    %1606 = vmatpush1.xpose.msra.mxu0 0.0
    %1607 = vmatprep.subr.mxu0 0.0
    %1608 = vmatpush1.xpose.msra.mxu0 %v1575
    %1609 = vmatprep.subr.mxu0 0.0
    %1610 = vmatpush2.xpose.msra.mxu0 0.0
    %1611 = vmatprep.subr.mxu0 0.0
    %1612 = vmatpush2.xpose.msra.mxu0 0.0
    %1613 = vmatprep.subr.mxu0 0.0
    %1614 = vmatpush2.xpose.msra.mxu0 0.0
    %1615 = vmatprep.subr.mxu0 0.0
    %1616 = vmatpush2.xpose.msra.mxu0 0.0
    %1617 = vmatprep.subr.mxu0 0.0
    %1618 = vmatpush2.xpose.msra.mxu0 0.0
    %1619 = vmatprep.subr.mxu0 0.0
    %1620 = vmatpush2.xpose.msra.mxu0 0.0
    %1621 = vmatprep.subr.mxu0 0.0
    %1622 = vmatpush2.xpose.msra.mxu0 0.0
    %1623 = vmatprep.subr.mxu0 0.0
    %1624 = vmatpush2.xpose.msra.mxu0 0.0
    %1625 = vmatprep.subr.mxu0 0.0
    %1626 = vmatpush2.xpose.msra.mxu0 0.0
    %1627 = vmatprep.subr.mxu0 0.0
    %1628 = vmatpush2.xpose.msra.mxu0 0.0
    %1629 = vmatprep.subr.mxu0 0.0
    %1630 = vmatpush2.xpose.msra.mxu0 0.0
    %1631 = vmatprep.subr.mxu0 0.0
    %1632 = vmatpush2.xpose.msra.mxu0 0.0
    %1633 = vmatprep.subr.mxu0 0.0
    %1634 = vmatpush2.xpose.msra.mxu0 0.0
    %1635 = vmatprep.subr.mxu0 0.0
    %1636 = vmatpush2.xpose.msra.mxu0 0.0
    %1637 = vmatprep.subr.mxu0 0.0
    %1638 = vmatpush2.xpose.msra.mxu0 0.0
    %1639 = vmatprep.subr.mxu0 0.0
    %1640 = vmatpush2.xpose.msra.mxu0 0.0
    %1641 = vmatprep.mubr.f32.mxu0 0.0
    %1642 = vmatmul.mubr.f32.gmra.mxu0 %v1573
    %v1643 = vpop.f32.mrf.mxu0
    %v1644 = vadd.f32 0.0, %v1643
    %v1645 = vpop.f32.mrf.mxu0
    %1646 = vdwg.mxu0
    %v1647 = vsel %vm1074, %v1644, -1000000.0
    %v1648 = vsel %vm394, %v1647, -inf
    %1649 = vmax.xlane.f32.xlu0 %v1648
    %v1650 = vpop.xlane.xlu0 %1649
    %v1651 = vsub.f32 %v1647, %v1650
    %v1652 = vmul.f32 %v1651, 1.442695
    %v1653 = vpow.pop %v1652
    %v1654 = vsel %vm394, %v1653, 0.0
    %1655 = vadd.xlane.f32.xlu0 %v1654
    %v1656 = vpop.xlane.xlu0 %1655
    %v1657 = vrcp.pop %v1656
    %v1658 = vmul.f32 %v1653, %v1657
    %1659 = vrot.lane.b32.xlu0 %v386, 104
    %v1660 = vpop.permute.xlu0 %1659
    %v1663 = vsel %vm394, %v1658, 0
    %1665 = vmatprep.subr.mxu0 0.0
    %1666 = vmatpush1.msra.mxu0 0.0
    %1667 = vmatprep.subr.mxu0 0.0
    %1668 = vmatpush1.msra.mxu0 0.0
    %1669 = vmatprep.subr.mxu0 0.0
    %1670 = vmatpush1.msra.mxu0 0.0
    %1671 = vmatprep.subr.mxu0 0.0
    %1672 = vmatpush1.msra.mxu0 0.0
    %1673 = vmatprep.subr.mxu0 0.0
    %1674 = vmatpush1.msra.mxu0 0.0
    %1675 = vmatprep.subr.mxu0 0.0
    %1676 = vmatpush1.msra.mxu0 0.0
    %1677 = vmatprep.subr.mxu0 0.0
    %1678 = vmatpush1.msra.mxu0 0.0
    %1679 = vmatprep.subr.mxu0 0.0
    %1680 = vmatpush1.msra.mxu0 0.0
    %1681 = vmatprep.subr.mxu0 0.0
    %1682 = vmatpush1.msra.mxu0 0.0
    %1683 = vmatprep.subr.mxu0 0.0
    %1684 = vmatpush1.msra.mxu0 0.0
    %1685 = vmatprep.subr.mxu0 0.0
    %1686 = vmatpush1.msra.mxu0 0.0
    %1687 = vmatprep.subr.mxu0 0.0
    %1688 = vmatpush1.msra.mxu0 0.0
    %1689 = vmatprep.subr.mxu0 0.0
    %1690 = vmatpush1.msra.mxu0 0.0
    %1691 = vmatprep.subr.mxu0 0.0
    %1692 = vmatpush1.msra.mxu0 0.0
    %1693 = vmatprep.subr.mxu0 0.0
    %1694 = vmatpush1.msra.mxu0 0.0
    %1695 = vmatprep.subr.mxu0 0.0
    %1696 = vmatpush1.msra.mxu0 %v1660
    %1697 = vmatprep.subr.mxu0 0.0
    %1698 = vmatpush2.msra.mxu0 0.0
    %1699 = vmatprep.subr.mxu0 0.0
    %1700 = vmatpush2.msra.mxu0 0.0
    %1701 = vmatprep.subr.mxu0 0.0
    %1702 = vmatpush2.msra.mxu0 0.0
    %1703 = vmatprep.subr.mxu0 0.0
    %1704 = vmatpush2.msra.mxu0 0.0
    %1705 = vmatprep.subr.mxu0 0.0
    %1706 = vmatpush2.msra.mxu0 0.0
    %1707 = vmatprep.subr.mxu0 0.0
    %1708 = vmatpush2.msra.mxu0 0.0
    %1709 = vmatprep.subr.mxu0 0.0
    %1710 = vmatpush2.msra.mxu0 0.0
    %1711 = vmatprep.subr.mxu0 0.0
    %1712 = vmatpush2.msra.mxu0 0.0
    %1713 = vmatprep.subr.mxu0 0.0
    %1714 = vmatpush2.msra.mxu0 0.0
    %1715 = vmatprep.subr.mxu0 0.0
    %1716 = vmatpush2.msra.mxu0 0.0
    %1717 = vmatprep.subr.mxu0 0.0
    %1718 = vmatpush2.msra.mxu0 0.0
    %1719 = vmatprep.subr.mxu0 0.0
    %1720 = vmatpush2.msra.mxu0 0.0
    %1721 = vmatprep.subr.mxu0 0.0
    %1722 = vmatpush2.msra.mxu0 0.0
    %1723 = vmatprep.subr.mxu0 0.0
    %1724 = vmatpush2.msra.mxu0 0.0
    %1725 = vmatprep.subr.mxu0 0.0
    %1726 = vmatpush2.msra.mxu0 0.0
    %1727 = vmatprep.subr.mxu0 0.0
    %1728 = vmatpush2.msra.mxu0 0.0
    %1729 = vmatprep.mubr.f32.mxu0 0.0
    %1730 = vmatmul.mubr.f32.gmra.mxu0 %v1663
    %v1731 = vpop.f32.mrf.mxu0
    %v1732 = vadd.f32 0.0, %v1731
    %v1733 = vpop.f32.mrf.mxu0
    %1734 = vdwg.mxu0
    %1736 = vrot.lane.b32.xlu0 %v1400, 8
    %v1737 = vpop.permute.xlu0 %1736
    %1740 = vrot.lane.b32.xlu0 %v1566, 16
    %v1741 = vpop.permute.xlu0 %1740
    %1744 = vrot.lane.b32.xlu0 %v1732, 24
    %v1745 = vpop.permute.xlu0 %1744
    %v1747 = vsel %vm394, %v1233, %v1737
    %v1748 = vsel %vm1068, %v1747, %v1741
    %v1749 = vsel %vm1070, %v1748, %v1745
    %v1750 = vld [vmem:[#allocation15] sm:$0xff]
    %v1751 = vld [vmem:[#allocation15 + $0x8] sm:$0xff]
    %v1752 = vld [vmem:[#allocation15 + $0x10] sm:$0xff]
    %v1753 = vld [vmem:[#allocation15 + $0x18] sm:$0xff]
    %v1755 = vsel %vm137, %v1071, 0
    %v1758 = vsel %vm137, %v1749, 0
    %1760 = vmatprep.subr.mxu0 0.0
    %1761 = vmatpush1.msra.mxu0 0.0
    %1762 = vmatprep.subr.mxu0 0.0
    %1763 = vmatpush1.msra.mxu0 0.0
    %1764 = vmatprep.subr.mxu0 0.0
    %1765 = vmatpush1.msra.mxu0 0.0
    %1766 = vmatprep.subr.mxu0 0.0
    %1767 = vmatpush1.msra.mxu0 0.0
    %1768 = vmatprep.subr.mxu0 0.0
    %1769 = vmatpush1.msra.mxu0 0.0
    %1770 = vmatprep.subr.mxu0 0.0
    %1771 = vmatpush1.msra.mxu0 0.0
    %1772 = vmatprep.subr.mxu0 0.0
    %1773 = vmatpush1.msra.mxu0 0.0
    %1774 = vmatprep.subr.mxu0 0.0
    %1775 = vmatpush1.msra.mxu0 0.0
    %1776 = vmatprep.subr.mxu0 0.0
    %1777 = vmatpush1.msra.mxu0 0.0
    %1778 = vmatprep.subr.mxu0 0.0
    %1779 = vmatpush1.msra.mxu0 0.0
    %1780 = vmatprep.subr.mxu0 0.0
    %1781 = vmatpush1.msra.mxu0 0.0
    %1782 = vmatprep.subr.mxu0 0.0
    %1783 = vmatpush1.msra.mxu0 0.0
    %1784 = vmatprep.subr.mxu0 0.0
    %1785 = vmatpush1.msra.mxu0 %v1753
    %1786 = vmatprep.subr.mxu0 0.0
    %1787 = vmatpush1.msra.mxu0 %v1752
    %1788 = vmatprep.subr.mxu0 0.0
    %1789 = vmatpush1.msra.mxu0 %v1751
    %1790 = vmatprep.subr.mxu0 0.0
    %1791 = vmatpush1.msra.mxu0 %v1750
    %1792 = vmatprep.subr.mxu0 0.0
    %1793 = vmatpush2.msra.mxu0 0.0
    %1794 = vmatprep.subr.mxu0 0.0
    %1795 = vmatpush2.msra.mxu0 0.0
    %1796 = vmatprep.subr.mxu0 0.0
    %1797 = vmatpush2.msra.mxu0 0.0
    %1798 = vmatprep.subr.mxu0 0.0
    %1799 = vmatpush2.msra.mxu0 0.0
    %1800 = vmatprep.subr.mxu0 0.0
    %1801 = vmatpush2.msra.mxu0 0.0
    %1802 = vmatprep.subr.mxu0 0.0
    %1803 = vmatpush2.msra.mxu0 0.0
    %1804 = vmatprep.subr.mxu0 0.0
    %1805 = vmatpush2.msra.mxu0 0.0
    %1806 = vmatprep.subr.mxu0 0.0
    %1807 = vmatpush2.msra.mxu0 0.0
    %1808 = vmatprep.subr.mxu0 0.0
    %1809 = vmatpush2.msra.mxu0 0.0
    %1810 = vmatprep.subr.mxu0 0.0
    %1811 = vmatpush2.msra.mxu0 0.0
    %1812 = vmatprep.subr.mxu0 0.0
    %1813 = vmatpush2.msra.mxu0 0.0
    %1814 = vmatprep.subr.mxu0 0.0
    %1815 = vmatpush2.msra.mxu0 0.0
    %1816 = vmatprep.subr.mxu0 0.0
    %1817 = vmatpush2.msra.mxu0 0.0
    %1818 = vmatprep.subr.mxu0 0.0
    %1819 = vmatpush2.msra.mxu0 0.0
    %1820 = vmatprep.subr.mxu0 0.0
    %1821 = vmatpush2.msra.mxu0 0.0
    %1822 = vmatprep.subr.mxu0 0.0
    %1823 = vmatpush2.msra.mxu0 0.0
    %1824 = vmatprep.mubr.f32.mxu0 0.0
    %1825 = vmatmul.mubr.f32.gmra.mxu0 %v1755
    %v1826 = vpop.f32.mrf.mxu0
    %v1827 = vadd.f32 0.0, %v1826
    %v1828 = vpop.f32.mrf.mxu0
    %1829 = vmatprep.mubr.f32.mxu0 0.0
    %1830 = vmatmul.mubr.f32.gmra.mxu0 %v1758
    %v1831 = vpop.f32.mrf.mxu0
    %v1832 = vadd.f32 0.0, %v1831
    %v1833 = vpop.f32.mrf.mxu0
    %1834 = vdwg.mxu0
    %1835 = vst.msk [vmem:[#allocation16] sm:$0xff] %vm137, %v1827
    %1836 = vst.msk [vmem:[#allocation16 + $0x8] sm:$0xff] %vm137, %v1832
    // Predicated region
    $region58: #{tpu_custom_call.1} parent=1 // pred_check
      _
    $region59: #{tpu_custom_call.1} parent=1 // pred_check_branch
      %1838 = sbr.rel (0) target = $region61
    $region60: #{tpu_custom_call.1} parent=1 // pred_region
      %s1840 = ssub.s32 256, 256
      %1841 = vsyncadd [#allocation6], %s1840
      %s1842 = sshll.u32 [#allocation16], 4
      %s1843 = int_to_ptr.vmem [resolvable:$true] %s1842
      %1848 = dma.vmem_to_hbm [thread:$0]  %s1843, 256, %s8, [#allocation6], 128, 128, 8
    $region61: #{tpu_custom_call.1} parent=1 // pred_fallthru
      _
    // Predicated region
    $region62: #{tpu_custom_call.1} parent=1 // pred_check
      _
    $region63: #{tpu_custom_call.1} parent=1 // pred_check_branch
      %1850 = sbr.rel (0) target = $region65
    $region64: #{tpu_custom_call.1} parent=1 // pred_region
      %1851 = dma.done [#allocation6], 256
    $region65: #{tpu_custom_call.1} parent=1 // pred_fallthru
      _
    %1852 = vsyncpa [#allocation5], 1
    %1853 = vsyncpa [#allocation8], 1
    %1854 = vsyncpa [#allocation11], 1
    %1855 = vsyncpa [#allocation14], 1
    %1856 = vsyncpa [#allocation6], 1

</llo_original>
